<compile_context>
chip_gen: v7x
topology: tpu7x:2x2x1
jax: 0.10.0
libtpu: 0.0.40
codegen_flags: <defaults>
</compile_context>

<pallas_src>
import functools

import jax
import jax.numpy as jnp
from jax.experimental import pallas as pl
from jax.experimental.pallas import tpu as pltpu


def _gclstm_kernel(x_ref, h_ref, c_ref, w_ref, th_ref, aux_ref, lw_ref,
                   out_ref, h0_ref, c0_ref):
    """One row-tile of nodes: GCLSTM gate math + relu + linear head.

    x_ref  : (tile_n, Din)      node features
    h_ref  : (tile_n, D)        hidden state
    c_ref  : (tile_n, D)        cell state
    w_ref  : (Din, 4D)          input-gate weights [W_i|W_f|W_c|W_o]   (math layout, act @ W)
    th_ref : (D, 4D)            ChebConv(K=1) weights [Th_i|Th_f|Th_c|Th_o]
    aux_ref: (1, 8D)            [bias_ifco (4D) | wc_i wc_f (2D) | wc_o (D) | lin_b (D)]
    lw_ref : (D, D)             linear head weight (in, out)
    out_ref/h0_ref/c0_ref : (tile_n, D) outputs
    """
    D = c_ref.shape[-1]
    c = c_ref[...]

    bias = aux_ref[:, 0:4 * D]           # folded conv + gate biases
    wc_if = aux_ref[:, 4 * D:6 * D]      # [w_c_i | w_c_f]
    wc_o = aux_ref[:, 6 * D:7 * D]
    lin_b = aux_ref[:, 7 * D:8 * D]

    # Gate pre-activations: two MXU passes, all four gates at once along lanes.
    g = (jnp.dot(x_ref[...], w_ref[...], preferred_element_type=jnp.float32)
         + jnp.dot(h_ref[...], th_ref[...], preferred_element_type=jnp.float32)
         + bias)

    # i and f gates together on one contiguous 2D-wide slice (c broadcast twice on lanes).
    c2 = jnp.concatenate([c, c], axis=-1)
    if_gates = jax.nn.sigmoid(g[:, 0:2 * D] + wc_if * c2)
    i_gate = if_gates[:, 0:D]
    f_gate = if_gates[:, D:2 * D]

    t_cell = jnp.tanh(g[:, 2 * D:3 * D])
    c_new = f_gate * c + i_gate * t_cell
    o_gate = jax.nn.sigmoid(g[:, 3 * D:4 * D] + wc_o * c_new)
    h_new = o_gate * jnp.tanh(c_new)

    # Head: relu(h_0) @ W_lin + b_lin
    hr = jnp.maximum(h_new, 0.0)
    out = jnp.dot(hr, lw_ref[...], preferred_element_type=jnp.float32) + lin_b

    # Direct stores: no lane concatenate, no pad column, no post-kernel slicing.
    out_ref[...] = out
    h0_ref[...] = h_new
    c0_ref[...] = c_new


def init_params(key, node_dim, embed_dim):
    """Deterministic parameter init matching GCLSTM(K=1) + nn.Linear shapes."""
    ks = jax.random.split(key, 8)
    D = embed_dim
    scale = 0.1
    # W_i, W_f, W_c, W_o : (node_dim, embed_dim) each, stacked along lanes.
    W = scale * jax.random.normal(ks[0], (node_dim, 4 * D), jnp.float32)
    # ChebConv(K=1) weights for conv_i/f/c/o : (embed_dim, embed_dim) each (math layout).
    Theta = scale * jax.random.normal(ks[1], (D, 4 * D), jnp.float32)
    # ChebConv biases for conv_i/f/c/o.
    conv_b = scale * jax.random.normal(ks[2], (1, 4 * D), jnp.float32)
    # Peephole weights w_c_i, w_c_f, w_c_o : (1, embed_dim) each.
    w_c = scale * jax.random.normal(ks[3], (1, 3 * D), jnp.float32)
    # Gate biases b_i, b_f, b_c, b_o : (1, embed_dim) each.
    b = scale * jax.random.normal(ks[4], (1, 4 * D), jnp.float32)
    # nn.Linear(embed_dim, embed_dim): stored as (in, out) so the kernel does x @ W.
    lin_W = scale * jax.random.normal(ks[5], (D, D), jnp.float32)
    lin_b = scale * jax.random.normal(ks[6], (1, D), jnp.float32)
    return dict(W=W, Theta=Theta, conv_b=conv_b, w_c=w_c, b=b, lin_W=lin_W, lin_b=lin_b)


def _chip_defaults():
    """Returns (num_tensorcores_per_chip, max_rows_per_tile).

    v5e/v6e have 1 TC per chip, v7x has 2.  Rows-per-tile caps keep the
    double-buffered tile footprint well inside the scoped-VMEM budget
    (16 MiB default on v5e, 32 MiB on v6e/v7x; we raise the limit to 32 MiB).
    """
    n_tc, max_rows = 1, 4096        # safe default (covers v5e / unknown)
    kind = ""
    try:
        kind = jax.devices()[0].device_kind.lower()
    except Exception:
        pass
    if "v7" in kind:
        n_tc, max_rows = 2, 4096    # 2 TCs/chip; only 64 MiB physical VMEM per TC
    elif "v6" in kind:
        n_tc, max_rows = 1, 8192    # 128 MiB physical VMEM -> bigger tiles OK
    # Cross-check against real hardware info when available (less fragile than
    # device_kind string sniffing).
    try:
        vmem = int(getattr(pltpu.get_tpu_info(), "vmem_capacity_bytes", 0) or 0)
        if vmem and vmem < 100 * (1 << 20):   # small-VMEM part: stay conservative
            max_rows = min(max_rows, 4096)
    except Exception:
        pass
    return n_tc, max_rows


@functools.partial(jax.jit, static_argnames=("tile_n", "core_split"))
def _forward_impl(params, x, h, c, *, tile_n, core_split):
    N, Din = x.shape
    D = params["Theta"].shape[0]
    n_tiles = pl.cdiv(N, tile_n)

    # Fold conv/gate biases and pack the small per-lane vectors into one (1, 8D) aux.
    bias = params["conv_b"] + params["b"]
    aux = jnp.concatenate([bias, params["w_c"], params["lin_b"]], axis=-1)

    row = lambda i: (i, 0)     # tiled over nodes
    full = lambda i: (0, 0)    # small weights stay resident

    if core_split:
        semantics = (pltpu.CORE_PARALLEL,)   # real 2-TC split on v7x
    else:
        semantics = (pltpu.PARALLEL,)

    out, h0, c0 = pl.pallas_call(
        _gclstm_kernel,
        out_shape=(
            jax.ShapeDtypeStruct((N, D), jnp.float32),
            jax.ShapeDtypeStruct((N, D), jnp.float32),
            jax.ShapeDtypeStruct((N, D), jnp.float32),
        ),
        grid=(n_tiles,),
        in_specs=[
            pl.BlockSpec((tile_n, Din), row),    # x
            pl.BlockSpec((tile_n, D), row),      # h
            pl.BlockSpec((tile_n, D), row),      # c
            pl.BlockSpec((Din, 4 * D), full),    # W   (input weights, all gates)
            pl.BlockSpec((D, 4 * D), full),      # Theta (ChebConv K=1 weights)
            pl.BlockSpec((1, 8 * D), full),      # packed bias / peephole / lin_b
            pl.BlockSpec((D, D), full),          # linear head weight
        ],
        out_specs=(
            pl.BlockSpec((tile_n, D), row),      # out = relu(h0) @ lin_W + lin_b
            pl.BlockSpec((tile_n, D), row),      # h_0
            pl.BlockSpec((tile_n, D), row),      # c_0
        ),
        compiler_params=pltpu.CompilerParams(
            dimension_semantics=semantics,
            vmem_limit_bytes=32 * 1024 * 1024,
        ),
    )(x, h, c, params["W"], params["Theta"], aux, params["lin_W"])
    return out, h0, c0


def recurrent_gcn_forward(params, x, edge_index, edge_weight, h, c, *,
                          tile_n=None, K=1):
    """Returns (relu(h_0) @ W_lin + b_lin, h_0, c_0) — same tuple as the torch module."""
    if K != 1:
        # TODO(synk): ChebConv with K > 1 (true graph propagation) is not implemented.
        raise NotImplementedError("Pallas RecurrentGCN kernel only supports ChebConv K=1.")
    del edge_index, edge_weight  # K=1 ChebConv: T_0(L~) = I, graph structure unused.

    N, _ = x.shape
    D = params["Theta"].shape[0]
    if h is None:
        h = jnp.zeros((N, D), jnp.float32)
    if c is None:
        c = jnp.zeros((N, D), jnp.float32)

    n_tc, max_rows = _chip_defaults()
    if tile_n is None:
        n_tiles = max(n_tc, pl.cdiv(N, max_rows))
        if n_tc > 1:
            n_tiles = ((n_tiles + n_tc - 1) // n_tc) * n_tc   # even split across TCs
        tile_n = ((pl.cdiv(N, n_tiles) + 7) // 8) * 8          # sublane multiple
    grid_n = pl.cdiv(N, tile_n)
    core_split = (n_tc > 1) and (grid_n >= n_tc) and (grid_n % n_tc == 0)
    return _forward_impl(params, x, h, c, tile_n=tile_n, core_split=core_split)


def _reference_forward(params, x, h, c):
    """Pure-JAX reference mirroring torch GCLSTM(K=1) + Linear semantics."""
    D = params["Theta"].shape[0]
    W, Th = params["W"], params["Theta"]
    cb, wc, b = params["conv_b"], params["w_c"], params["b"]
    g = x @ W + h @ Th + cb + b
    gi, gf, gc, go = (g[:, k * D:(k + 1) * D] for k in range(4))
    wci, wcf, wco = (wc[:, k * D:(k + 1) * D] for k in range(3))
    i = jax.nn.sigmoid(gi + wci * c)
    f = jax.nn.sigmoid(gf + wcf * c)
    t = jnp.tanh(gc)
    c0 = f * c + i * t
    o = jax.nn.sigmoid(go + wco * c0)
    h0 = o * jnp.tanh(c0)
    out = jnp.maximum(h0, 0.0) @ params["lin_W"] + params["lin_b"]
    return out, h0, c0


if __name__ == "__main__":
    node_dim, embed_dim = 8, 32
    num_nodes, num_edges = 256, 512

    key = jax.random.PRNGKey(0)
    k_param, k_x, k_h, k_c, k_ei, k_ew = jax.random.split(key, 6)

    params = init_params(k_param, node_dim, embed_dim)

    x = jax.random.normal(k_x, (num_nodes, node_dim), jnp.float32)
    h = jax.random.normal(k_h, (num_nodes, embed_dim), jnp.float32)
    c = jax.random.normal(k_c, (num_nodes, embed_dim), jnp.float32)
    edge_index = jax.random.randint(k_ei, (2, num_edges), 0, num_nodes, jnp.int32)
    edge_weight = jax.random.uniform(k_ew, (num_edges,), jnp.float32)

    out, h0, c0 = recurrent_gcn_forward(params, x, edge_index, edge_weight, h, c)
    jax.block_until_ready((out, h0, c0))

    ref_out, ref_h0, ref_c0 = _reference_forward(params, x, h, c)
    assert jnp.allclose(out, ref_out, rtol=1e-5, atol=1e-5)
    assert jnp.allclose(h0, ref_h0, rtol=1e-5, atol=1e-5)
    assert jnp.allclose(c0, ref_c0, rtol=1e-5, atol=1e-5)

    print("KERNEL_OK")
</pallas_src>

<mosaic_0001>
module attributes {stable_mosaic.version = 11 : i64} {
  func.func @_gclstm_kernel(%arg0: i32, %arg1: memref<256x8xf32, #tpu.memory_space<vmem>>, %arg2: memref<256x32xf32, #tpu.memory_space<vmem>>, %arg3: memref<256x32xf32, #tpu.memory_space<vmem>>, %arg4: memref<8x128xf32, #tpu.memory_space<vmem>>, %arg5: memref<32x128xf32, #tpu.memory_space<vmem>>, %arg6: memref<1x256xf32, #tpu.memory_space<vmem>>, %arg7: memref<32x32xf32, #tpu.memory_space<vmem>>, %arg8: memref<256x32xf32, #tpu.memory_space<vmem>>, %arg9: memref<256x32xf32, #tpu.memory_space<vmem>>, %arg10: memref<256x32xf32, #tpu.memory_space<vmem>>) attributes {dimension_semantics = [#tpu.dimension_semantics<parallel>], iteration_bounds = array<i64: 1>, scalar_prefetch = 0 : i64, scratch_operands = 0 : i64, tpu.core_type = #tpu.core_type<tc>, window_params = [{transform_indices = @transform_0, window_bounds = array<i64: 256, 8>}, {transform_indices = @transform_1, window_bounds = array<i64: 256, 32>}, {transform_indices = @transform_2, window_bounds = array<i64: 256, 32>}, {pipeline_mode = #tpu.pipeline_mode<synchronous>, transform_indices = @transform_3, window_bounds = array<i64: 8, 128>}, {pipeline_mode = #tpu.pipeline_mode<synchronous>, transform_indices = @transform_4, window_bounds = array<i64: 32, 128>}, {pipeline_mode = #tpu.pipeline_mode<synchronous>, transform_indices = @transform_5, window_bounds = array<i64: 1, 256>}, {pipeline_mode = #tpu.pipeline_mode<synchronous>, transform_indices = @transform_6, window_bounds = array<i64: 32, 32>}, {transform_indices = @transform_7, window_bounds = array<i64: 256, 32>}, {transform_indices = @transform_8, window_bounds = array<i64: 256, 32>}, {transform_indices = @transform_9, window_bounds = array<i64: 256, 32>}]} {
    %c0 = arith.constant 0 : index
    %c0_0 = arith.constant 0 : index
    %0 = vector.load %arg3[%c0, %c0_0] : memref<256x32xf32, #tpu.memory_space<vmem>>, vector<256x32xf32>
    %c0_1 = arith.constant 0 : index
    %c0_2 = arith.constant 0 : index
    %1 = vector.load %arg6[%c0_1, %c0_2] : memref<1x256xf32, #tpu.memory_space<vmem>>, vector<1x128xf32>
    %c0_3 = arith.constant 0 : index
    %c128 = arith.constant 128 : index
    %2 = vector.load %arg6[%c0_3, %c128] : memref<1x256xf32, #tpu.memory_space<vmem>>, vector<1x64xf32>
    %c0_4 = arith.constant 0 : index
    %c192 = arith.constant 192 : index
    %3 = vector.load %arg6[%c0_4, %c192] : memref<1x256xf32, #tpu.memory_space<vmem>>, vector<1x32xf32>
    %c0_5 = arith.constant 0 : index
    %c224 = arith.constant 224 : index
    %4 = vector.load %arg6[%c0_5, %c224] : memref<1x256xf32, #tpu.memory_space<vmem>>, vector<1x32xf32>
    %c0_6 = arith.constant 0 : index
    %c0_7 = arith.constant 0 : index
    %5 = vector.load %arg1[%c0_6, %c0_7] : memref<256x8xf32, #tpu.memory_space<vmem>>, vector<256x8xf32>
    %c0_8 = arith.constant 0 : index
    %c0_9 = arith.constant 0 : index
    %6 = vector.load %arg4[%c0_8, %c0_9] : memref<8x128xf32, #tpu.memory_space<vmem>>, vector<8x128xf32>
    %cst = arith.constant dense<0.000000e+00> : vector<256x128xf32>
    %7 = tpu.matmul %5, %6, %cst {dimension_numbers = #tpu.dot_dimension_numbers<[1], [0], [0], [1], [0, 0, 1, 1], [], []>} : vector<256x8xf32>, vector<8x128xf32>, vector<256x128xf32> -> vector<256x128xf32>
    %c0_10 = arith.constant 0 : index
    %c0_11 = arith.constant 0 : index
    %8 = vector.load %arg2[%c0_10, %c0_11] : memref<256x32xf32, #tpu.memory_space<vmem>>, vector<256x32xf32>
    %c0_12 = arith.constant 0 : index
    %c0_13 = arith.constant 0 : index
    %9 = vector.load %arg5[%c0_12, %c0_13] : memref<32x128xf32, #tpu.memory_space<vmem>>, vector<32x128xf32>
    %cst_14 = arith.constant dense<0.000000e+00> : vector<256x128xf32>
    %10 = tpu.matmul %8, %9, %cst_14 {dimension_numbers = #tpu.dot_dimension_numbers<[1], [0], [0], [1], [0, 0, 1, 1], [], []>} : vector<256x32xf32>, vector<32x128xf32>, vector<256x128xf32> -> vector<256x128xf32>
    %11 = arith.addf %7, %10 : vector<256x128xf32>
    %12 = vector.broadcast %1 : vector<1x128xf32> to vector<256x128xf32>
    %13 = arith.addf %11, %12 : vector<256x128xf32>
    %14 = tpu.concatenate %0, %0 in 1 : vector<256x32xf32>, vector<256x32xf32> -> vector<256x64xf32>
    %15 = vector.extract_strided_slice %13 {offsets = [0, 0], sizes = [256, 64], strides = [1, 1]} : vector<256x128xf32> to vector<256x64xf32>
    %16 = vector.broadcast %2 : vector<1x64xf32> to vector<256x64xf32>
    %17 = arith.mulf %16, %14 : vector<256x64xf32>
    %18 = arith.addf %15, %17 : vector<256x64xf32>
    %19 = arith.negf %18 : vector<256x64xf32>
    %20 = math.exp %19 : vector<256x64xf32>
    %cst_15 = arith.constant 1.000000e+00 : f32
    %21 = vector.broadcast %cst_15 : f32 to vector<256x64xf32>
    %22 = arith.addf %21, %20 : vector<256x64xf32>
    %23 = arith.divf %21, %22 : vector<256x64xf32>
    %24 = vector.extract_strided_slice %23 {offsets = [0, 0], sizes = [256, 32], strides = [1, 1]} : vector<256x64xf32> to vector<256x32xf32>
    %25 = vector.extract_strided_slice %23 {offsets = [0, 32], sizes = [256, 32], strides = [1, 1]} : vector<256x64xf32> to vector<256x32xf32>
    %26 = vector.extract_strided_slice %13 {offsets = [0, 64], sizes = [256, 32], strides = [1, 1]} : vector<256x128xf32> to vector<256x32xf32>
    %27 = math.tanh %26 : vector<256x32xf32>
    %28 = arith.mulf %25, %0 : vector<256x32xf32>
    %29 = arith.mulf %24, %27 : vector<256x32xf32>
    %30 = arith.addf %28, %29 : vector<256x32xf32>
    %31 = vector.extract_strided_slice %13 {offsets = [0, 96], sizes = [256, 32], strides = [1, 1]} : vector<256x128xf32> to vector<256x32xf32>
    %32 = vector.broadcast %3 : vector<1x32xf32> to vector<256x32xf32>
    %33 = arith.mulf %32, %30 : vector<256x32xf32>
    %34 = arith.addf %31, %33 : vector<256x32xf32>
    %35 = arith.negf %34 : vector<256x32xf32>
    %36 = math.exp %35 : vector<256x32xf32>
    %cst_16 = arith.constant 1.000000e+00 : f32
    %37 = vector.broadcast %cst_16 : f32 to vector<256x32xf32>
    %38 = arith.addf %37, %36 : vector<256x32xf32>
    %39 = arith.divf %37, %38 : vector<256x32xf32>
    %40 = math.tanh %30 : vector<256x32xf32>
    %41 = arith.mulf %39, %40 : vector<256x32xf32>
    %cst_17 = arith.constant 0.000000e+00 : f32
    %42 = vector.broadcast %cst_17 : f32 to vector<256x32xf32>
    %43 = arith.maximumf %41, %42 : vector<256x32xf32>
    %c0_18 = arith.constant 0 : index
    %c0_19 = arith.constant 0 : index
    %44 = vector.load %arg7[%c0_18, %c0_19] : memref<32x32xf32, #tpu.memory_space<vmem>>, vector<32x32xf32>
    %cst_20 = arith.constant dense<0.000000e+00> : vector<256x32xf32>
    %45 = tpu.matmul %43, %44, %cst_20 {dimension_numbers = #tpu.dot_dimension_numbers<[1], [0], [0], [1], [0, 0, 1, 1], [], []>} : vector<256x32xf32>, vector<32x32xf32>, vector<256x32xf32> -> vector<256x32xf32>
    %46 = vector.broadcast %4 : vector<1x32xf32> to vector<256x32xf32>
    %47 = arith.addf %45, %46 : vector<256x32xf32>
    %c0_21 = arith.constant 0 : index
    %c0_22 = arith.constant 0 : index
    %48 = vector.load %arg8[%c0_21, %c0_22] : memref<256x32xf32, #tpu.memory_space<vmem>>, vector<256x32xf32>
    tpu.vector_store %arg8[%c0_21, %c0_22], %47 {strides = array<i32>} : memref<256x32xf32, #tpu.memory_space<vmem>>, vector<256x32xf32>,
    %c0_23 = arith.constant 0 : index
    %c0_24 = arith.constant 0 : index
    %49 = vector.load %arg9[%c0_23, %c0_24] : memref<256x32xf32, #tpu.memory_space<vmem>>, vector<256x32xf32>
    tpu.vector_store %arg9[%c0_23, %c0_24], %41 {strides = array<i32>} : memref<256x32xf32, #tpu.memory_space<vmem>>, vector<256x32xf32>,
    %c0_25 = arith.constant 0 : index
    %c0_26 = arith.constant 0 : index
    %50 = vector.load %arg10[%c0_25, %c0_26] : memref<256x32xf32, #tpu.memory_space<vmem>>, vector<256x32xf32>
    tpu.vector_store %arg10[%c0_25, %c0_26], %30 {strides = array<i32>} : memref<256x32xf32, #tpu.memory_space<vmem>>, vector<256x32xf32>,
    return
  }
  func.func @transform_0(%arg0: i32) -> (i32, i32) {
    %c0_i32 = arith.constant 0 : i32
    %c0_i32_0 = arith.constant 0 : i32
    return %arg0, %c0_i32 : i32, i32
  }
  func.func @transform_1(%arg0: i32) -> (i32, i32) {
    %c0_i32 = arith.constant 0 : i32
    %c0_i32_0 = arith.constant 0 : i32
    return %arg0, %c0_i32 : i32, i32
  }
  func.func @transform_2(%arg0: i32) -> (i32, i32) {
    %c0_i32 = arith.constant 0 : i32
    %c0_i32_0 = arith.constant 0 : i32
    return %arg0, %c0_i32 : i32, i32
  }
  func.func @transform_3(%arg0: i32) -> (i32, i32) {
    %c0_i32 = arith.constant 0 : i32
    %c0_i32_0 = arith.constant 0 : i32
    %c0_i32_1 = arith.constant 0 : i32
    return %c0_i32, %c0_i32_0 : i32, i32
  }
  func.func @transform_4(%arg0: i32) -> (i32, i32) {
    %c0_i32 = arith.constant 0 : i32
    %c0_i32_0 = arith.constant 0 : i32
    %c0_i32_1 = arith.constant 0 : i32
    return %c0_i32, %c0_i32_0 : i32, i32
  }
  func.func @transform_5(%arg0: i32) -> (i32, i32) {
    %c0_i32 = arith.constant 0 : i32
    %c0_i32_0 = arith.constant 0 : i32
    %c0_i32_1 = arith.constant 0 : i32
    return %c0_i32, %c0_i32_0 : i32, i32
  }
  func.func @transform_6(%arg0: i32) -> (i32, i32) {
    %c0_i32 = arith.constant 0 : i32
    %c0_i32_0 = arith.constant 0 : i32
    %c0_i32_1 = arith.constant 0 : i32
    return %c0_i32, %c0_i32_0 : i32, i32
  }
  func.func @transform_7(%arg0: i32) -> (i32, i32) {
    %c0_i32 = arith.constant 0 : i32
    %c0_i32_0 = arith.constant 0 : i32
    return %arg0, %c0_i32 : i32, i32
  }
  func.func @transform_8(%arg0: i32) -> (i32, i32) {
    %c0_i32 = arith.constant 0 : i32
    %c0_i32_0 = arith.constant 0 : i32
    return %arg0, %c0_i32 : i32, i32
  }
  func.func @transform_9(%arg0: i32) -> (i32, i32) {
    %c0_i32 = arith.constant 0 : i32
    %c0_i32_0 = arith.constant 0 : i32
    return %arg0, %c0_i32 : i32, i32
  }
}

</mosaic_0001>

<llo_original>
// kernel: _forward_impl.1
$region0: #{_forward_impl.1}
  #allocation0 [shape = 'u32[]', space=smem, size = 0x4, offset = 0x4, fixed_abs, tag = 'smem constant byte address 0x4 - core index']
  #allocation1 [shape = 'u32[144,128]{1,0:T(1,128)}', space=vmem, size = 0x12000, scoped, tag = 'internal scratch']
  %s0 = inlined_call_operand.vmem [shape: f32[256,8], index: 0, kind: input, shape index: {}]
  %s1 = inlined_call_operand.vmem [shape: f32[256,32], index: 1, kind: input, shape index: {}]
  %s2 = inlined_call_operand.vmem [shape: f32[256,32], index: 2, kind: input, shape index: {}]
  %s3 = inlined_call_operand.vmem [shape: f32[8,128], index: 3, kind: input, shape index: {}]
  %s4 = inlined_call_operand.vmem [shape: f32[32,128], index: 4, kind: input, shape index: {}]
  %s5 = inlined_call_operand.vmem [shape: f32[1,256], index: 5, kind: input, shape index: {}]
  %s6 = inlined_call_operand.vmem [shape: f32[32,32], index: 6, kind: input, shape index: {}]
  %s7 = inlined_call_operand.vmem [shape: f32[256,32], index: 7, kind: output, shape index: {0}]
  %s8 = inlined_call_operand.vmem [shape: f32[256,32], index: 8, kind: output, shape index: {1}]
  %s9 = inlined_call_operand.vmem [shape: f32[256,32], index: 9, kind: output, shape index: {2}]
  %10 = xla_tuple %s7, %s8, %s9
  %s11 = sld [smem:[#allocation0]]
  $region54: #{_forward_impl.1} parent=0
    _
  %s13 = ssub.s32 1, %s11
  %s14 = scalar_select 0, %s13, %s11
  // Predicated region
  $region2: #{_forward_impl.1} parent=0 // pred_check
    _
  $region3: #{_forward_impl.1} parent=0 // pred_check_branch
    %16 = sbr.rel (0) target = $region5
  $region4: #{_forward_impl.1} parent=0 // pred_region
    _
  $region5: #{_forward_impl.1} parent=0 // pred_fallthru
    _
  // Predicated region
  $region6: #{_forward_impl.1} parent=0 // pred_check
    _
  $region7: #{_forward_impl.1} parent=0 // pred_check_branch
    %18 = sbr.rel (0) target = $region9
  $region8: #{_forward_impl.1} parent=0 // pred_region
    _
  $region9: #{_forward_impl.1} parent=0 // pred_fallthru
    _
  // Predicated region
  $region10: #{_forward_impl.1} parent=0 // pred_check
    _
  $region11: #{_forward_impl.1} parent=0 // pred_check_branch
    %20 = sbr.rel (0) target = $region13
  $region12: #{_forward_impl.1} parent=0 // pred_region
    _
  $region13: #{_forward_impl.1} parent=0 // pred_fallthru
    _
  // Predicated region
  $region14: #{_forward_impl.1} parent=0 // pred_check
    _
  $region15: #{_forward_impl.1} parent=0 // pred_check_branch
    %22 = sbr.rel (0) target = $region17
  $region16: #{_forward_impl.1} parent=0 // pred_region
    _
  $region17: #{_forward_impl.1} parent=0 // pred_fallthru
    _
  // Predicated region
  $region18: #{_forward_impl.1} parent=0 // pred_check
    _
  $region19: #{_forward_impl.1} parent=0 // pred_check_branch
    %24 = sbr.rel (0) target = $region21
  $region20: #{_forward_impl.1} parent=0 // pred_region
    _
  $region21: #{_forward_impl.1} parent=0 // pred_fallthru
    _
  // Predicated region
  $region22: #{_forward_impl.1} parent=0 // pred_check
    _
  $region23: #{_forward_impl.1} parent=0 // pred_check_branch
    %26 = sbr.rel (0) target = $region25
  $region24: #{_forward_impl.1} parent=0 // pred_region
    _
  $region25: #{_forward_impl.1} parent=0 // pred_fallthru
    _
  // Predicated region
  $region26: #{_forward_impl.1} parent=0 // pred_check
    _
  $region27: #{_forward_impl.1} parent=0 // pred_check_branch
    %28 = sbr.rel (0) target = $region29
  $region28: #{_forward_impl.1} parent=0 // pred_region
    _
  $region29: #{_forward_impl.1} parent=0 // pred_fallthru
    _
  %v29 = vld [vmem:[%s2] sm:$0xff]
  %v30 = vld [vmem:[%s2 + $0x8] sm:$0xff]
  %v31 = vld [vmem:[%s2 + $0x10] sm:$0xff]
  %v32 = vld [vmem:[%s2 + $0x18] sm:$0xff]
  %v33 = vld [vmem:[%s2 + $0x20] sm:$0xff]
  %v34 = vld [vmem:[%s2 + $0x28] sm:$0xff]
  %v35 = vld [vmem:[%s2 + $0x30] sm:$0xff]
  %v36 = vld [vmem:[%s2 + $0x38] sm:$0xff]
  %v37 = vld [vmem:[%s2 + $0x40] sm:$0xff]
  %v38 = vld [vmem:[%s2 + $0x48] sm:$0xff]
  %v39 = vld [vmem:[%s2 + $0x50] sm:$0xff]
  %v40 = vld [vmem:[%s2 + $0x58] sm:$0xff]
  %v41 = vld [vmem:[%s2 + $0x60] sm:$0xff]
  %v42 = vld [vmem:[%s2 + $0x68] sm:$0xff]
  %v43 = vld [vmem:[%s2 + $0x70] sm:$0xff]
  %v44 = vld [vmem:[%s2 + $0x78] sm:$0xff]
  %v45 = vld [vmem:[%s2 + $0x80] sm:$0xff]
  %v46 = vld [vmem:[%s2 + $0x88] sm:$0xff]
  %v47 = vld [vmem:[%s2 + $0x90] sm:$0xff]
  %v48 = vld [vmem:[%s2 + $0x98] sm:$0xff]
  %v49 = vld [vmem:[%s2 + $0xa0] sm:$0xff]
  %v50 = vld [vmem:[%s2 + $0xa8] sm:$0xff]
  %v51 = vld [vmem:[%s2 + $0xb0] sm:$0xff]
  %v52 = vld [vmem:[%s2 + $0xb8] sm:$0xff]
  %v53 = vld [vmem:[%s2 + $0xc0] sm:$0xff]
  %v54 = vld [vmem:[%s2 + $0xc8] sm:$0xff]
  %v55 = vld [vmem:[%s2 + $0xd0] sm:$0xff]
  %v56 = vld [vmem:[%s2 + $0xd8] sm:$0xff]
  %v57 = vld [vmem:[%s2 + $0xe0] sm:$0xff]
  %v58 = vld [vmem:[%s2 + $0xe8] sm:$0xff]
  %v59 = vld [vmem:[%s2 + $0xf0] sm:$0xff]
  %v60 = vld [vmem:[%s2 + $0xf8] sm:$0xff]
  %v61 = vld [vmem:[%s5] sm:$0x1]
  %v62 = vld [vmem:[%s5 + $0x1] sm:$0x1]
  %v63 = vld [vmem:[%s0] sm:$0xff]
  %v64 = vld [vmem:[%s0 + $0x8] sm:$0xff]
  %v65 = vld [vmem:[%s0 + $0x10] sm:$0xff]
  %v66 = vld [vmem:[%s0 + $0x18] sm:$0xff]
  %v67 = vld [vmem:[%s0 + $0x20] sm:$0xff]
  %v68 = vld [vmem:[%s0 + $0x28] sm:$0xff]
  %v69 = vld [vmem:[%s0 + $0x30] sm:$0xff]
  %v70 = vld [vmem:[%s0 + $0x38] sm:$0xff]
  %v71 = vld [vmem:[%s0 + $0x40] sm:$0xff]
  %v72 = vld [vmem:[%s0 + $0x48] sm:$0xff]
  %v73 = vld [vmem:[%s0 + $0x50] sm:$0xff]
  %v74 = vld [vmem:[%s0 + $0x58] sm:$0xff]
  %v75 = vld [vmem:[%s0 + $0x60] sm:$0xff]
  %v76 = vld [vmem:[%s0 + $0x68] sm:$0xff]
  %v77 = vld [vmem:[%s0 + $0x70] sm:$0xff]
  %v78 = vld [vmem:[%s0 + $0x78] sm:$0xff]
  %v79 = vld [vmem:[%s0 + $0x80] sm:$0xff]
  %v80 = vld [vmem:[%s0 + $0x88] sm:$0xff]
  %v81 = vld [vmem:[%s0 + $0x90] sm:$0xff]
  %v82 = vld [vmem:[%s0 + $0x98] sm:$0xff]
  %v83 = vld [vmem:[%s0 + $0xa0] sm:$0xff]
  %v84 = vld [vmem:[%s0 + $0xa8] sm:$0xff]
  %v85 = vld [vmem:[%s0 + $0xb0] sm:$0xff]
  %v86 = vld [vmem:[%s0 + $0xb8] sm:$0xff]
  %v87 = vld [vmem:[%s0 + $0xc0] sm:$0xff]
  %v88 = vld [vmem:[%s0 + $0xc8] sm:$0xff]
  %v89 = vld [vmem:[%s0 + $0xd0] sm:$0xff]
  %v90 = vld [vmem:[%s0 + $0xd8] sm:$0xff]
  %v91 = vld [vmem:[%s0 + $0xe0] sm:$0xff]
  %v92 = vld [vmem:[%s0 + $0xe8] sm:$0xff]
  %v93 = vld [vmem:[%s0 + $0xf0] sm:$0xff]
  %v94 = vld [vmem:[%s0 + $0xf8] sm:$0xff]
  %v95 = vld [vmem:[%s3] sm:$0xff]
  %v96 = vld [vmem:[%s1] sm:$0xff]
  %v97 = vld [vmem:[%s1 + $0x8] sm:$0xff]
  %v98 = vld [vmem:[%s1 + $0x10] sm:$0xff]
  %v99 = vld [vmem:[%s1 + $0x18] sm:$0xff]
  %v100 = vld [vmem:[%s1 + $0x20] sm:$0xff]
  %v101 = vld [vmem:[%s1 + $0x28] sm:$0xff]
  %v102 = vld [vmem:[%s1 + $0x30] sm:$0xff]
  %v103 = vld [vmem:[%s1 + $0x38] sm:$0xff]
  %v104 = vld [vmem:[%s1 + $0x40] sm:$0xff]
  %v105 = vld [vmem:[%s1 + $0x48] sm:$0xff]
  %v106 = vld [vmem:[%s1 + $0x50] sm:$0xff]
  %v107 = vld [vmem:[%s1 + $0x58] sm:$0xff]
  %v108 = vld [vmem:[%s1 + $0x60] sm:$0xff]
  %v109 = vld [vmem:[%s1 + $0x68] sm:$0xff]
  %v110 = vld [vmem:[%s1 + $0x70] sm:$0xff]
  %v111 = vld [vmem:[%s1 + $0x78] sm:$0xff]
  %v112 = vld [vmem:[%s1 + $0x80] sm:$0xff]
  %v113 = vld [vmem:[%s1 + $0x88] sm:$0xff]
  %v114 = vld [vmem:[%s1 + $0x90] sm:$0xff]
  %v115 = vld [vmem:[%s1 + $0x98] sm:$0xff]
  %v116 = vld [vmem:[%s1 + $0xa0] sm:$0xff]
  %v117 = vld [vmem:[%s1 + $0xa8] sm:$0xff]
  %v118 = vld [vmem:[%s1 + $0xb0] sm:$0xff]
  %v119 = vld [vmem:[%s1 + $0xb8] sm:$0xff]
  %v120 = vld [vmem:[%s1 + $0xc0] sm:$0xff]
  %v121 = vld [vmem:[%s1 + $0xc8] sm:$0xff]
  %v122 = vld [vmem:[%s1 + $0xd0] sm:$0xff]
  %v123 = vld [vmem:[%s1 + $0xd8] sm:$0xff]
  %v124 = vld [vmem:[%s1 + $0xe0] sm:$0xff]
  %v125 = vld [vmem:[%s1 + $0xe8] sm:$0xff]
  %v126 = vld [vmem:[%s1 + $0xf0] sm:$0xff]
  %v127 = vld [vmem:[%s1 + $0xf8] sm:$0xff]
  %v128 = vld [vmem:[%s4] sm:$0xff]
  %v129 = vld [vmem:[%s4 + $0x8] sm:$0xff]
  %v130 = vld [vmem:[%s4 + $0x10] sm:$0xff]
  %v131 = vld [vmem:[%s4 + $0x18] sm:$0xff]
  %vm132 = vcmask 261120
  %v134 = vsel %vm132, %v96, 0
  %v137 = vsel %vm132, %v97, 0
  %v140 = vsel %vm132, %v98, 0
  %v143 = vsel %vm132, %v99, 0
  %v146 = vsel %vm132, %v100, 0
  %v149 = vsel %vm132, %v101, 0
  %v152 = vsel %vm132, %v102, 0
  %v155 = vsel %vm132, %v103, 0
  %v158 = vsel %vm132, %v104, 0
  %v161 = vsel %vm132, %v105, 0
  %v164 = vsel %vm132, %v106, 0
  %v167 = vsel %vm132, %v107, 0
  %v170 = vsel %vm132, %v108, 0
  %v173 = vsel %vm132, %v109, 0
  %v176 = vsel %vm132, %v110, 0
  %v179 = vsel %vm132, %v111, 0
  %v182 = vsel %vm132, %v112, 0
  %v185 = vsel %vm132, %v113, 0
  %v188 = vsel %vm132, %v114, 0
  %v191 = vsel %vm132, %v115, 0
  %v194 = vsel %vm132, %v116, 0
  %v197 = vsel %vm132, %v117, 0
  %v200 = vsel %vm132, %v118, 0
  %v203 = vsel %vm132, %v119, 0
  %v206 = vsel %vm132, %v120, 0
  %v209 = vsel %vm132, %v121, 0
  %v212 = vsel %vm132, %v122, 0
  %v215 = vsel %vm132, %v123, 0
  %v218 = vsel %vm132, %v124, 0
  %v221 = vsel %vm132, %v125, 0
  %v224 = vsel %vm132, %v126, 0
  %v227 = vsel %vm132, %v127, 0
  %229 = vmatprep.subr.mxu0 0.0
  %230 = vmatpush1.msra.mxu0 %v128
  %231 = vmatprep.subr.mxu0 0.0
  %232 = vmatpush1.msra.mxu0 %v129
  %233 = vmatprep.subr.mxu0 0.0
  %234 = vmatpush1.msra.mxu0 %v130
  %235 = vmatprep.subr.mxu0 0.0
  %236 = vmatpush1.msra.mxu0 %v131
  %237 = vmatprep.subr.mxu0 0.0
  %238 = vmatpush1.msra.mxu0 0.0
  %239 = vmatprep.subr.mxu0 0.0
  %240 = vmatpush1.msra.mxu0 0.0
  %241 = vmatprep.subr.mxu0 0.0
  %242 = vmatpush1.msra.mxu0 0.0
  %243 = vmatprep.subr.mxu0 0.0
  %244 = vmatpush1.msra.mxu0 0.0
  %245 = vmatprep.subr.mxu0 0.0
  %246 = vmatpush1.msra.mxu0 0.0
  %247 = vmatprep.subr.mxu0 0.0
  %248 = vmatpush1.msra.mxu0 0.0
  %249 = vmatprep.subr.mxu0 0.0
  %250 = vmatpush1.msra.mxu0 0.0
  %251 = vmatprep.subr.mxu0 0.0
  %252 = vmatpush1.msra.mxu0 0.0
  %253 = vmatprep.subr.mxu0 0.0
  %254 = vmatpush1.msra.mxu0 0.0
  %255 = vmatprep.subr.mxu0 0.0
  %256 = vmatpush1.msra.mxu0 0.0
  %257 = vmatprep.subr.mxu0 0.0
  %258 = vmatpush1.msra.mxu0 0.0
  %259 = vmatprep.subr.mxu0 0.0
  %260 = vmatpush1.msra.mxu0 0.0
  %261 = vmatprep.subr.mxu0 0.0
  %262 = vmatpush1.msra.mxu0 0.0
  %263 = vmatprep.subr.mxu0 0.0
  %264 = vmatpush1.msra.mxu0 0.0
  %265 = vmatprep.subr.mxu0 0.0
  %266 = vmatpush1.msra.mxu0 0.0
  %267 = vmatprep.subr.mxu0 0.0
  %268 = vmatpush1.msra.mxu0 0.0
  %269 = vmatprep.subr.mxu0 0.0
  %270 = vmatpush1.msra.mxu0 0.0
  %271 = vmatprep.subr.mxu0 0.0
  %272 = vmatpush1.msra.mxu0 0.0
  %273 = vmatprep.subr.mxu0 0.0
  %274 = vmatpush1.msra.mxu0 0.0
  %275 = vmatprep.subr.mxu0 0.0
  %276 = vmatpush1.msra.mxu0 0.0
  %277 = vmatprep.subr.mxu0 0.0
  %278 = vmatpush1.msra.mxu0 0.0
  %279 = vmatprep.subr.mxu0 0.0
  %280 = vmatpush1.msra.mxu0 0.0
  %281 = vmatprep.subr.mxu0 0.0
  %282 = vmatpush1.msra.mxu0 0.0
  %283 = vmatprep.subr.mxu0 0.0
  %284 = vmatpush1.msra.mxu0 0.0
  %285 = vmatprep.subr.mxu0 0.0
  %286 = vmatpush1.msra.mxu0 0.0
  %287 = vmatprep.subr.mxu0 0.0
  %288 = vmatpush1.msra.mxu0 0.0
  %289 = vmatprep.subr.mxu0 0.0
  %290 = vmatpush1.msra.mxu0 0.0
  %291 = vmatprep.subr.mxu0 0.0
  %292 = vmatpush1.msra.mxu0 0.0
  %293 = vmatprep.mubr.f32.mxu0 0.0
  %294 = vmatmul.mubr.f32.gmra.mrb[0].mxu0 %v134
  %v295 = vpop.f32.mrb[0].mxu0
  %v296 = vadd.f32 0.0, %v295
  %v297 = vpop.f32.mrb[0].mxu0
  %298 = vmatprep.mubr.f32.mxu0 0.0
  %299 = vmatmul.mubr.f32.gmra.mrb[0].mxu0 %v137
  %v300 = vpop.f32.mrb[0].mxu0
  %v301 = vadd.f32 0.0, %v300
  %v302 = vpop.f32.mrb[0].mxu0
  %303 = vmatprep.mubr.f32.mxu0 0.0
  %304 = vmatmul.mubr.f32.gmra.mrb[0].mxu0 %v140
  %v305 = vpop.f32.mrb[0].mxu0
  %v306 = vadd.f32 0.0, %v305
  %v307 = vpop.f32.mrb[0].mxu0
  %308 = vmatprep.mubr.f32.mxu0 0.0
  %309 = vmatmul.mubr.f32.gmra.mrb[0].mxu0 %v143
  %v310 = vpop.f32.mrb[0].mxu0
  %v311 = vadd.f32 0.0, %v310
  %v312 = vpop.f32.mrb[0].mxu0
  %313 = vmatprep.mubr.f32.mxu0 0.0
  %314 = vmatmul.mubr.f32.gmra.mrb[0].mxu0 %v146
  %v315 = vpop.f32.mrb[0].mxu0
  %v316 = vadd.f32 0.0, %v315
  %v317 = vpop.f32.mrb[0].mxu0
  %318 = vmatprep.mubr.f32.mxu0 0.0
  %319 = vmatmul.mubr.f32.gmra.mrb[0].mxu0 %v149
  %v320 = vpop.f32.mrb[0].mxu0
  %v321 = vadd.f32 0.0, %v320
  %v322 = vpop.f32.mrb[0].mxu0
  %323 = vmatprep.mubr.f32.mxu0 0.0
  %324 = vmatmul.mubr.f32.gmra.mrb[0].mxu0 %v152
  %v325 = vpop.f32.mrb[0].mxu0
  %v326 = vadd.f32 0.0, %v325
  %v327 = vpop.f32.mrb[0].mxu0
  %328 = vmatprep.mubr.f32.mxu0 0.0
  %329 = vmatmul.mubr.f32.gmra.mrb[0].mxu0 %v155
  %v330 = vpop.f32.mrb[0].mxu0
  %v331 = vadd.f32 0.0, %v330
  %v332 = vpop.f32.mrb[0].mxu0
  %333 = vmatprep.mubr.f32.mxu0 0.0
  %334 = vmatmul.mubr.f32.gmra.mrb[0].mxu0 %v158
  %v335 = vpop.f32.mrb[0].mxu0
  %v336 = vadd.f32 0.0, %v335
  %v337 = vpop.f32.mrb[0].mxu0
  %338 = vmatprep.mubr.f32.mxu0 0.0
  %339 = vmatmul.mubr.f32.gmra.mrb[0].mxu0 %v161
  %v340 = vpop.f32.mrb[0].mxu0
  %v341 = vadd.f32 0.0, %v340
  %v342 = vpop.f32.mrb[0].mxu0
  %343 = vmatprep.mubr.f32.mxu0 0.0
  %344 = vmatmul.mubr.f32.gmra.mrb[0].mxu0 %v164
  %v345 = vpop.f32.mrb[0].mxu0
  %v346 = vadd.f32 0.0, %v345
  %v347 = vpop.f32.mrb[0].mxu0
  %348 = vmatprep.mubr.f32.mxu0 0.0
  %349 = vmatmul.mubr.f32.gmra.mrb[0].mxu0 %v167
  %v350 = vpop.f32.mrb[0].mxu0
  %v351 = vadd.f32 0.0, %v350
  %v352 = vpop.f32.mrb[0].mxu0
  %353 = vmatprep.mubr.f32.mxu0 0.0
  %354 = vmatmul.mubr.f32.gmra.mrb[0].mxu0 %v170
  %v355 = vpop.f32.mrb[0].mxu0
  %v356 = vadd.f32 0.0, %v355
  %v357 = vpop.f32.mrb[0].mxu0
  %358 = vmatprep.mubr.f32.mxu0 0.0
  %359 = vmatmul.mubr.f32.gmra.mrb[0].mxu0 %v173
  %v360 = vpop.f32.mrb[0].mxu0
  %v361 = vadd.f32 0.0, %v360
  %v362 = vpop.f32.mrb[0].mxu0
  %363 = vmatprep.mubr.f32.mxu0 0.0
  %364 = vmatmul.mubr.f32.gmra.mrb[0].mxu0 %v176
  %v365 = vpop.f32.mrb[0].mxu0
  %v366 = vadd.f32 0.0, %v365
  %v367 = vpop.f32.mrb[0].mxu0
  %368 = vmatprep.mubr.f32.mxu0 0.0
  %369 = vmatmul.mubr.f32.gmra.mrb[0].mxu0 %v179
  %v370 = vpop.f32.mrb[0].mxu0
  %v371 = vadd.f32 0.0, %v370
  %v372 = vpop.f32.mrb[0].mxu0
  %373 = vmatprep.mubr.f32.mxu0 0.0
  %374 = vmatmul.mubr.f32.gmra.mrb[0].mxu0 %v182
  %v375 = vpop.f32.mrb[0].mxu0
  %v376 = vadd.f32 0.0, %v375
  %v377 = vpop.f32.mrb[0].mxu0
  %378 = vmatprep.mubr.f32.mxu0 0.0
  %379 = vmatmul.mubr.f32.gmra.mrb[0].mxu0 %v185
  %v380 = vpop.f32.mrb[0].mxu0
  %v381 = vadd.f32 0.0, %v380
  %v382 = vpop.f32.mrb[0].mxu0
  %383 = vmatprep.mubr.f32.mxu0 0.0
  %384 = vmatmul.mubr.f32.gmra.mrb[0].mxu0 %v188
  %v385 = vpop.f32.mrb[0].mxu0
  %v386 = vadd.f32 0.0, %v385
  %v387 = vpop.f32.mrb[0].mxu0
  %388 = vmatprep.mubr.f32.mxu0 0.0
  %389 = vmatmul.mubr.f32.gmra.mrb[0].mxu0 %v191
  %v390 = vpop.f32.mrb[0].mxu0
  %v391 = vadd.f32 0.0, %v390
  %v392 = vpop.f32.mrb[0].mxu0
  %393 = vmatprep.mubr.f32.mxu0 0.0
  %394 = vmatmul.mubr.f32.gmra.mrb[0].mxu0 %v194
  %v395 = vpop.f32.mrb[0].mxu0
  %v396 = vadd.f32 0.0, %v395
  %v397 = vpop.f32.mrb[0].mxu0
  %398 = vmatprep.mubr.f32.mxu0 0.0
  %399 = vmatmul.mubr.f32.gmra.mrb[0].mxu0 %v197
  %v400 = vpop.f32.mrb[0].mxu0
  %v401 = vadd.f32 0.0, %v400
  %v402 = vpop.f32.mrb[0].mxu0
  %403 = vmatprep.mubr.f32.mxu0 0.0
  %404 = vmatmul.mubr.f32.gmra.mrb[0].mxu0 %v200
  %v405 = vpop.f32.mrb[0].mxu0
  %v406 = vadd.f32 0.0, %v405
  %v407 = vpop.f32.mrb[0].mxu0
  %408 = vmatprep.mubr.f32.mxu0 0.0
  %409 = vmatmul.mubr.f32.gmra.mrb[0].mxu0 %v203
  %v410 = vpop.f32.mrb[0].mxu0
  %v411 = vadd.f32 0.0, %v410
  %v412 = vpop.f32.mrb[0].mxu0
  %413 = vmatprep.mubr.f32.mxu0 0.0
  %414 = vmatmul.mubr.f32.gmra.mrb[0].mxu0 %v206
  %v415 = vpop.f32.mrb[0].mxu0
  %v416 = vadd.f32 0.0, %v415
  %v417 = vpop.f32.mrb[0].mxu0
  %418 = vmatprep.mubr.f32.mxu0 0.0
  %419 = vmatmul.mubr.f32.gmra.mrb[0].mxu0 %v209
  %v420 = vpop.f32.mrb[0].mxu0
  %v421 = vadd.f32 0.0, %v420
  %v422 = vpop.f32.mrb[0].mxu0
  %423 = vmatprep.mubr.f32.mxu0 0.0
  %424 = vmatmul.mubr.f32.gmra.mrb[0].mxu0 %v212
  %v425 = vpop.f32.mrb[0].mxu0
  %v426 = vadd.f32 0.0, %v425
  %v427 = vpop.f32.mrb[0].mxu0
  %428 = vmatprep.mubr.f32.mxu0 0.0
  %429 = vmatmul.mubr.f32.gmra.mrb[0].mxu0 %v215
  %v430 = vpop.f32.mrb[0].mxu0
  %v431 = vadd.f32 0.0, %v430
  %v432 = vpop.f32.mrb[0].mxu0
  %433 = vmatprep.mubr.f32.mxu0 0.0
  %434 = vmatmul.mubr.f32.gmra.mrb[0].mxu0 %v218
  %v435 = vpop.f32.mrb[0].mxu0
  %v436 = vadd.f32 0.0, %v435
  %v437 = vpop.f32.mrb[0].mxu0
  %438 = vmatprep.mubr.f32.mxu0 0.0
  %439 = vmatmul.mubr.f32.gmra.mrb[0].mxu0 %v221
  %v440 = vpop.f32.mrb[0].mxu0
  %v441 = vadd.f32 0.0, %v440
  %v442 = vpop.f32.mrb[0].mxu0
  %443 = vmatprep.mubr.f32.mxu0 0.0
  %444 = vmatmul.mubr.f32.gmra.mrb[0].mxu0 %v224
  %v445 = vpop.f32.mrb[0].mxu0
  %v446 = vadd.f32 0.0, %v445
  %v447 = vpop.f32.mrb[0].mxu0
  %448 = vmatprep.mubr.f32.mxu0 0.0
  %449 = vmatmul.mubr.f32.gmra.mrb[0].mxu0 %v227
  %v450 = vpop.f32.mrb[0].mxu0
  %v451 = vadd.f32 0.0, %v450
  %v452 = vpop.f32.mrb[0].mxu0
  %453 = vdwg.mxu0
  %vm454 = vcmask 64512
  %v456 = vsel %vm454, %v63, 0
  %v459 = vsel %vm454, %v64, 0
  %v462 = vsel %vm454, %v65, 0
  %v465 = vsel %vm454, %v66, 0
  %v468 = vsel %vm454, %v67, 0
  %v471 = vsel %vm454, %v68, 0
  %v474 = vsel %vm454, %v69, 0
  %v477 = vsel %vm454, %v70, 0
  %v480 = vsel %vm454, %v71, 0
  %v483 = vsel %vm454, %v72, 0
  %v486 = vsel %vm454, %v73, 0
  %v489 = vsel %vm454, %v74, 0
  %v492 = vsel %vm454, %v75, 0
  %v495 = vsel %vm454, %v76, 0
  %v498 = vsel %vm454, %v77, 0
  %v501 = vsel %vm454, %v78, 0
  %v504 = vsel %vm454, %v79, 0
  %v507 = vsel %vm454, %v80, 0
  %v510 = vsel %vm454, %v81, 0
  %v513 = vsel %vm454, %v82, 0
  %v516 = vsel %vm454, %v83, 0
  %v519 = vsel %vm454, %v84, 0
  %v522 = vsel %vm454, %v85, 0
  %v525 = vsel %vm454, %v86, 0
  %v528 = vsel %vm454, %v87, 0
  %v531 = vsel %vm454, %v88, 0
  %v534 = vsel %vm454, %v89, 0
  %v537 = vsel %vm454, %v90, 0
  %v540 = vsel %vm454, %v91, 0
  %v543 = vsel %vm454, %v92, 0
  %v546 = vsel %vm454, %v93, 0
  %v549 = vsel %vm454, %v94, 0
  %551 = vmatprep.subr.mxu0 0.0
  %552 = vmatpush1.msra.mxu0 %v95
  %553 = vmatprep.subr.mxu0 0.0
  %554 = vmatpush1.msra.mxu0 0.0
  %555 = vmatprep.subr.mxu0 0.0
  %556 = vmatpush1.msra.mxu0 0.0
  %557 = vmatprep.subr.mxu0 0.0
  %558 = vmatpush1.msra.mxu0 0.0
  %559 = vmatprep.subr.mxu0 0.0
  %560 = vmatpush1.msra.mxu0 0.0
  %561 = vmatprep.subr.mxu0 0.0
  %562 = vmatpush1.msra.mxu0 0.0
  %563 = vmatprep.subr.mxu0 0.0
  %564 = vmatpush1.msra.mxu0 0.0
  %565 = vmatprep.subr.mxu0 0.0
  %566 = vmatpush1.msra.mxu0 0.0
  %567 = vmatprep.subr.mxu0 0.0
  %568 = vmatpush1.msra.mxu0 0.0
  %569 = vmatprep.subr.mxu0 0.0
  %570 = vmatpush1.msra.mxu0 0.0
  %571 = vmatprep.subr.mxu0 0.0
  %572 = vmatpush1.msra.mxu0 0.0
  %573 = vmatprep.subr.mxu0 0.0
  %574 = vmatpush1.msra.mxu0 0.0
  %575 = vmatprep.subr.mxu0 0.0
  %576 = vmatpush1.msra.mxu0 0.0
  %577 = vmatprep.subr.mxu0 0.0
  %578 = vmatpush1.msra.mxu0 0.0
  %579 = vmatprep.subr.mxu0 0.0
  %580 = vmatpush1.msra.mxu0 0.0
  %581 = vmatprep.subr.mxu0 0.0
  %582 = vmatpush1.msra.mxu0 0.0
  %583 = vmatprep.subr.mxu0 0.0
  %584 = vmatpush1.msra.mxu0 0.0
  %585 = vmatprep.subr.mxu0 0.0
  %586 = vmatpush1.msra.mxu0 0.0
  %587 = vmatprep.subr.mxu0 0.0
  %588 = vmatpush1.msra.mxu0 0.0
  %589 = vmatprep.subr.mxu0 0.0
  %590 = vmatpush1.msra.mxu0 0.0
  %591 = vmatprep.subr.mxu0 0.0
  %592 = vmatpush1.msra.mxu0 0.0
  %593 = vmatprep.subr.mxu0 0.0
  %594 = vmatpush1.msra.mxu0 0.0
  %595 = vmatprep.subr.mxu0 0.0
  %596 = vmatpush1.msra.mxu0 0.0
  %597 = vmatprep.subr.mxu0 0.0
  %598 = vmatpush1.msra.mxu0 0.0
  %599 = vmatprep.subr.mxu0 0.0
  %600 = vmatpush1.msra.mxu0 0.0
  %601 = vmatprep.subr.mxu0 0.0
  %602 = vmatpush1.msra.mxu0 0.0
  %603 = vmatprep.subr.mxu0 0.0
  %604 = vmatpush1.msra.mxu0 0.0
  %605 = vmatprep.subr.mxu0 0.0
  %606 = vmatpush1.msra.mxu0 0.0
  %607 = vmatprep.subr.mxu0 0.0
  %608 = vmatpush1.msra.mxu0 0.0
  %609 = vmatprep.subr.mxu0 0.0
  %610 = vmatpush1.msra.mxu0 0.0
  %611 = vmatprep.subr.mxu0 0.0
  %612 = vmatpush1.msra.mxu0 0.0
  %613 = vmatprep.subr.mxu0 0.0
  %614 = vmatpush1.msra.mxu0 0.0
  %615 = vmatprep.mubr.f32.mxu0 0.0
  %616 = vmatmul.mubr.f32.gmra.mrb[0].mxu0 %v456
  %v617 = vpop.f32.mrb[0].mxu0
  %v618 = vadd.f32 %v296, %v617
  %v619 = vpop.f32.mrb[0].mxu0
  %620 = vmatprep.mubr.f32.mxu0 0.0
  %621 = vmatmul.mubr.f32.gmra.mrb[0].mxu0 %v459
  %v622 = vpop.f32.mrb[0].mxu0
  %v623 = vadd.f32 %v301, %v622
  %v624 = vpop.f32.mrb[0].mxu0
  %625 = vmatprep.mubr.f32.mxu0 0.0
  %626 = vmatmul.mubr.f32.gmra.mrb[0].mxu0 %v462
  %v627 = vpop.f32.mrb[0].mxu0
  %v628 = vadd.f32 %v306, %v627
  %v629 = vpop.f32.mrb[0].mxu0
  %630 = vmatprep.mubr.f32.mxu0 0.0
  %631 = vmatmul.mubr.f32.gmra.mrb[0].mxu0 %v465
  %v632 = vpop.f32.mrb[0].mxu0
  %v633 = vadd.f32 %v311, %v632
  %v634 = vpop.f32.mrb[0].mxu0
  %635 = vmatprep.mubr.f32.mxu0 0.0
  %636 = vmatmul.mubr.f32.gmra.mrb[0].mxu0 %v468
  %v637 = vpop.f32.mrb[0].mxu0
  %v638 = vadd.f32 %v316, %v637
  %v639 = vpop.f32.mrb[0].mxu0
  %640 = vmatprep.mubr.f32.mxu0 0.0
  %641 = vmatmul.mubr.f32.gmra.mrb[0].mxu0 %v471
  %v642 = vpop.f32.mrb[0].mxu0
  %v643 = vadd.f32 %v321, %v642
  %v644 = vpop.f32.mrb[0].mxu0
  %645 = vmatprep.mubr.f32.mxu0 0.0
  %646 = vmatmul.mubr.f32.gmra.mrb[0].mxu0 %v474
  %v647 = vpop.f32.mrb[0].mxu0
  %v648 = vadd.f32 %v326, %v647
  %v649 = vpop.f32.mrb[0].mxu0
  %650 = vmatprep.mubr.f32.mxu0 0.0
  %651 = vmatmul.mubr.f32.gmra.mrb[0].mxu0 %v477
  %v652 = vpop.f32.mrb[0].mxu0
  %v653 = vadd.f32 %v331, %v652
  %v654 = vpop.f32.mrb[0].mxu0
  %655 = vmatprep.mubr.f32.mxu0 0.0
  %656 = vmatmul.mubr.f32.gmra.mrb[0].mxu0 %v480
  %v657 = vpop.f32.mrb[0].mxu0
  %v658 = vadd.f32 %v336, %v657
  %v659 = vpop.f32.mrb[0].mxu0
  %660 = vmatprep.mubr.f32.mxu0 0.0
  %661 = vmatmul.mubr.f32.gmra.mrb[0].mxu0 %v483
  %v662 = vpop.f32.mrb[0].mxu0
  %v663 = vadd.f32 %v341, %v662
  %v664 = vpop.f32.mrb[0].mxu0
  %665 = vmatprep.mubr.f32.mxu0 0.0
  %666 = vmatmul.mubr.f32.gmra.mrb[0].mxu0 %v486
  %v667 = vpop.f32.mrb[0].mxu0
  %v668 = vadd.f32 %v346, %v667
  %v669 = vpop.f32.mrb[0].mxu0
  %670 = vmatprep.mubr.f32.mxu0 0.0
  %671 = vmatmul.mubr.f32.gmra.mrb[0].mxu0 %v489
  %v672 = vpop.f32.mrb[0].mxu0
  %v673 = vadd.f32 %v351, %v672
  %v674 = vpop.f32.mrb[0].mxu0
  %675 = vmatprep.mubr.f32.mxu0 0.0
  %676 = vmatmul.mubr.f32.gmra.mrb[0].mxu0 %v492
  %v677 = vpop.f32.mrb[0].mxu0
  %v678 = vadd.f32 %v356, %v677
  %v679 = vpop.f32.mrb[0].mxu0
  %680 = vmatprep.mubr.f32.mxu0 0.0
  %681 = vmatmul.mubr.f32.gmra.mrb[0].mxu0 %v495
  %v682 = vpop.f32.mrb[0].mxu0
  %v683 = vadd.f32 %v361, %v682
  %v684 = vpop.f32.mrb[0].mxu0
  %685 = vmatprep.mubr.f32.mxu0 0.0
  %686 = vmatmul.mubr.f32.gmra.mrb[0].mxu0 %v498
  %v687 = vpop.f32.mrb[0].mxu0
  %v688 = vadd.f32 %v366, %v687
  %v689 = vpop.f32.mrb[0].mxu0
  %690 = vmatprep.mubr.f32.mxu0 0.0
  %691 = vmatmul.mubr.f32.gmra.mrb[0].mxu0 %v501
  %v692 = vpop.f32.mrb[0].mxu0
  %v693 = vadd.f32 %v371, %v692
  %v694 = vpop.f32.mrb[0].mxu0
  %695 = vmatprep.mubr.f32.mxu0 0.0
  %696 = vmatmul.mubr.f32.gmra.mrb[0].mxu0 %v504
  %v697 = vpop.f32.mrb[0].mxu0
  %v698 = vadd.f32 %v376, %v697
  %v699 = vpop.f32.mrb[0].mxu0
  %700 = vmatprep.mubr.f32.mxu0 0.0
  %701 = vmatmul.mubr.f32.gmra.mrb[0].mxu0 %v507
  %v702 = vpop.f32.mrb[0].mxu0
  %v703 = vadd.f32 %v381, %v702
  %v704 = vpop.f32.mrb[0].mxu0
  %705 = vmatprep.mubr.f32.mxu0 0.0
  %706 = vmatmul.mubr.f32.gmra.mrb[0].mxu0 %v510
  %v707 = vpop.f32.mrb[0].mxu0
  %v708 = vadd.f32 %v386, %v707
  %v709 = vpop.f32.mrb[0].mxu0
  %710 = vmatprep.mubr.f32.mxu0 0.0
  %711 = vmatmul.mubr.f32.gmra.mrb[0].mxu0 %v513
  %v712 = vpop.f32.mrb[0].mxu0
  %v713 = vadd.f32 %v391, %v712
  %v714 = vpop.f32.mrb[0].mxu0
  %715 = vmatprep.mubr.f32.mxu0 0.0
  %716 = vmatmul.mubr.f32.gmra.mrb[0].mxu0 %v516
  %v717 = vpop.f32.mrb[0].mxu0
  %v718 = vadd.f32 %v396, %v717
  %v719 = vpop.f32.mrb[0].mxu0
  %720 = vmatprep.mubr.f32.mxu0 0.0
  %721 = vmatmul.mubr.f32.gmra.mrb[0].mxu0 %v519
  %v722 = vpop.f32.mrb[0].mxu0
  %v723 = vadd.f32 %v401, %v722
  %v724 = vpop.f32.mrb[0].mxu0
  %725 = vmatprep.mubr.f32.mxu0 0.0
  %726 = vmatmul.mubr.f32.gmra.mrb[0].mxu0 %v522
  %v727 = vpop.f32.mrb[0].mxu0
  %v728 = vadd.f32 %v406, %v727
  %v729 = vpop.f32.mrb[0].mxu0
  %730 = vmatprep.mubr.f32.mxu0 0.0
  %731 = vmatmul.mubr.f32.gmra.mrb[0].mxu0 %v525
  %v732 = vpop.f32.mrb[0].mxu0
  %v733 = vadd.f32 %v411, %v732
  %v734 = vpop.f32.mrb[0].mxu0
  %735 = vmatprep.mubr.f32.mxu0 0.0
  %736 = vmatmul.mubr.f32.gmra.mrb[0].mxu0 %v528
  %v737 = vpop.f32.mrb[0].mxu0
  %v738 = vadd.f32 %v416, %v737
  %v739 = vpop.f32.mrb[0].mxu0
  %740 = vmatprep.mubr.f32.mxu0 0.0
  %741 = vmatmul.mubr.f32.gmra.mrb[0].mxu0 %v531
  %v742 = vpop.f32.mrb[0].mxu0
  %v743 = vadd.f32 %v421, %v742
  %v744 = vpop.f32.mrb[0].mxu0
  %745 = vmatprep.mubr.f32.mxu0 0.0
  %746 = vmatmul.mubr.f32.gmra.mrb[0].mxu0 %v534
  %v747 = vpop.f32.mrb[0].mxu0
  %v748 = vadd.f32 %v426, %v747
  %v749 = vpop.f32.mrb[0].mxu0
  %750 = vmatprep.mubr.f32.mxu0 0.0
  %751 = vmatmul.mubr.f32.gmra.mrb[0].mxu0 %v537
  %v752 = vpop.f32.mrb[0].mxu0
  %v753 = vadd.f32 %v431, %v752
  %v754 = vpop.f32.mrb[0].mxu0
  %755 = vmatprep.mubr.f32.mxu0 0.0
  %756 = vmatmul.mubr.f32.gmra.mrb[0].mxu0 %v540
  %v757 = vpop.f32.mrb[0].mxu0
  %v758 = vadd.f32 %v436, %v757
  %v759 = vpop.f32.mrb[0].mxu0
  %760 = vmatprep.mubr.f32.mxu0 0.0
  %761 = vmatmul.mubr.f32.gmra.mrb[0].mxu0 %v543
  %v762 = vpop.f32.mrb[0].mxu0
  %v763 = vadd.f32 %v441, %v762
  %v764 = vpop.f32.mrb[0].mxu0
  %765 = vmatprep.mubr.f32.mxu0 0.0
  %766 = vmatmul.mubr.f32.gmra.mrb[0].mxu0 %v546
  %v767 = vpop.f32.mrb[0].mxu0
  %v768 = vadd.f32 %v446, %v767
  %v769 = vpop.f32.mrb[0].mxu0
  %770 = vmatprep.mubr.f32.mxu0 0.0
  %771 = vmatmul.mubr.f32.gmra.mrb[0].mxu0 %v549
  %v772 = vpop.f32.mrb[0].mxu0
  %v773 = vadd.f32 %v451, %v772
  %v774 = vpop.f32.mrb[0].mxu0
  %775 = vdwg.mxu0
  %v777 = vlaneseq
  %v778 = vshrl.u32 %v777, 7
  %v779 = vsub.s32 0, %v778
  %v780 = vrot.slane %v61, %v779
  %v782 = vadd.f32 %v618, %v780
  %v783 = vadd.f32 %v623, %v780
  %v784 = vadd.f32 %v628, %v780
  %v785 = vadd.f32 %v633, %v780
  %v786 = vadd.f32 %v638, %v780
  %v787 = vadd.f32 %v643, %v780
  %v788 = vadd.f32 %v648, %v780
  %v789 = vadd.f32 %v653, %v780
  %v790 = vadd.f32 %v658, %v780
  %v791 = vadd.f32 %v663, %v780
  %v792 = vadd.f32 %v668, %v780
  %v793 = vadd.f32 %v673, %v780
  %v794 = vadd.f32 %v678, %v780
  %v795 = vadd.f32 %v683, %v780
  %v796 = vadd.f32 %v688, %v780
  %v797 = vadd.f32 %v693, %v780
  %v798 = vadd.f32 %v698, %v780
  %v799 = vadd.f32 %v703, %v780
  %v800 = vadd.f32 %v708, %v780
  %v801 = vadd.f32 %v713, %v780
  %v802 = vadd.f32 %v718, %v780
  %v803 = vadd.f32 %v723, %v780
  %v804 = vadd.f32 %v728, %v780
  %v805 = vadd.f32 %v733, %v780
  %v806 = vadd.f32 %v738, %v780
  %v807 = vadd.f32 %v743, %v780
  %v808 = vadd.f32 %v748, %v780
  %v809 = vadd.f32 %v753, %v780
  %v810 = vadd.f32 %v758, %v780
  %v811 = vadd.f32 %v763, %v780
  %v812 = vadd.f32 %v768, %v780
  %v813 = vadd.f32 %v773, %v780
  %846 = vrot.lane.b32.xlu0 %v29, 32
  %v847 = vpop.permute.xlu0 %846
  %848 = vrot.lane.b32.xlu0 %v30, 32
  %v849 = vpop.permute.xlu0 %848
  %850 = vrot.lane.b32.xlu0 %v31, 32
  %v851 = vpop.permute.xlu0 %850
  %852 = vrot.lane.b32.xlu0 %v32, 32
  %v853 = vpop.permute.xlu0 %852
  %854 = vrot.lane.b32.xlu0 %v33, 32
  %v855 = vpop.permute.xlu0 %854
  %856 = vrot.lane.b32.xlu0 %v34, 32
  %v857 = vpop.permute.xlu0 %856
  %858 = vrot.lane.b32.xlu0 %v35, 32
  %v859 = vpop.permute.xlu0 %858
  %860 = vrot.lane.b32.xlu0 %v36, 32
  %v861 = vpop.permute.xlu0 %860
  %862 = vrot.lane.b32.xlu0 %v37, 32
  %v863 = vpop.permute.xlu0 %862
  %864 = vrot.lane.b32.xlu0 %v38, 32
  %v865 = vpop.permute.xlu0 %864
  %866 = vrot.lane.b32.xlu0 %v39, 32
  %v867 = vpop.permute.xlu0 %866
  %868 = vrot.lane.b32.xlu0 %v40, 32
  %v869 = vpop.permute.xlu0 %868
  %870 = vrot.lane.b32.xlu0 %v41, 32
  %v871 = vpop.permute.xlu0 %870
  %872 = vrot.lane.b32.xlu0 %v42, 32
  %v873 = vpop.permute.xlu0 %872
  %874 = vrot.lane.b32.xlu0 %v43, 32
  %v875 = vpop.permute.xlu0 %874
  %876 = vrot.lane.b32.xlu0 %v44, 32
  %v877 = vpop.permute.xlu0 %876
  %878 = vrot.lane.b32.xlu0 %v45, 32
  %v879 = vpop.permute.xlu0 %878
  %880 = vrot.lane.b32.xlu0 %v46, 32
  %v881 = vpop.permute.xlu0 %880
  %882 = vrot.lane.b32.xlu0 %v47, 32
  %v883 = vpop.permute.xlu0 %882
  %884 = vrot.lane.b32.xlu0 %v48, 32
  %v885 = vpop.permute.xlu0 %884
  %886 = vrot.lane.b32.xlu0 %v49, 32
  %v887 = vpop.permute.xlu0 %886
  %888 = vrot.lane.b32.xlu0 %v50, 32
  %v889 = vpop.permute.xlu0 %888
  %890 = vrot.lane.b32.xlu0 %v51, 32
  %v891 = vpop.permute.xlu0 %890
  %892 = vrot.lane.b32.xlu0 %v52, 32
  %v893 = vpop.permute.xlu0 %892
  %894 = vrot.lane.b32.xlu0 %v53, 32
  %v895 = vpop.permute.xlu0 %894
  %896 = vrot.lane.b32.xlu0 %v54, 32
  %v897 = vpop.permute.xlu0 %896
  %898 = vrot.lane.b32.xlu0 %v55, 32
  %v899 = vpop.permute.xlu0 %898
  %900 = vrot.lane.b32.xlu0 %v56, 32
  %v901 = vpop.permute.xlu0 %900
  %902 = vrot.lane.b32.xlu0 %v57, 32
  %v903 = vpop.permute.xlu0 %902
  %904 = vrot.lane.b32.xlu0 %v58, 32
  %v905 = vpop.permute.xlu0 %904
  %906 = vrot.lane.b32.xlu0 %v59, 32
  %v907 = vpop.permute.xlu0 %906
  %908 = vrot.lane.b32.xlu0 %v60, 32
  %v909 = vpop.permute.xlu0 %908
  %v942 = vsel %vm132, %v29, %v847
  %v943 = vsel %vm132, %v30, %v849
  %v944 = vsel %vm132, %v31, %v851
  %v945 = vsel %vm132, %v32, %v853
  %v946 = vsel %vm132, %v33, %v855
  %v947 = vsel %vm132, %v34, %v857
  %v948 = vsel %vm132, %v35, %v859
  %v949 = vsel %vm132, %v36, %v861
  %v950 = vsel %vm132, %v37, %v863
  %v951 = vsel %vm132, %v38, %v865
  %v952 = vsel %vm132, %v39, %v867
  %v953 = vsel %vm132, %v40, %v869
  %v954 = vsel %vm132, %v41, %v871
  %v955 = vsel %vm132, %v42, %v873
  %v956 = vsel %vm132, %v43, %v875
  %v957 = vsel %vm132, %v44, %v877
  %v958 = vsel %vm132, %v45, %v879
  %v959 = vsel %vm132, %v46, %v881
  %v960 = vsel %vm132, %v47, %v883
  %v961 = vsel %vm132, %v48, %v885
  %v962 = vsel %vm132, %v49, %v887
  %v963 = vsel %vm132, %v50, %v889
  %v964 = vsel %vm132, %v51, %v891
  %v965 = vsel %vm132, %v52, %v893
  %v966 = vsel %vm132, %v53, %v895
  %v967 = vsel %vm132, %v54, %v897
  %v968 = vsel %vm132, %v55, %v899
  %v969 = vsel %vm132, %v56, %v901
  %v970 = vsel %vm132, %v57, %v903
  %v971 = vsel %vm132, %v58, %v905
  %v972 = vsel %vm132, %v59, %v907
  %v973 = vsel %vm132, %v60, %v909
  %v975 = vlaneseq
  %v976 = vshrl.u32 %v975, 7
  %v977 = vsub.s32 0, %v976
  %v978 = vrot.slane %v62, %v977
  %v980 = vmul.f32 %v978, %v942
  %v981 = vmul.f32 %v978, %v943
  %v982 = vmul.f32 %v978, %v944
  %v983 = vmul.f32 %v978, %v945
  %v984 = vmul.f32 %v978, %v946
  %v985 = vmul.f32 %v978, %v947
  %v986 = vmul.f32 %v978, %v948
  %v987 = vmul.f32 %v978, %v949
  %v988 = vmul.f32 %v978, %v950
  %v989 = vmul.f32 %v978, %v951
  %v990 = vmul.f32 %v978, %v952
  %v991 = vmul.f32 %v978, %v953
  %v992 = vmul.f32 %v978, %v954
  %v993 = vmul.f32 %v978, %v955
  %v994 = vmul.f32 %v978, %v956
  %v995 = vmul.f32 %v978, %v957
  %v996 = vmul.f32 %v978, %v958
  %v997 = vmul.f32 %v978, %v959
  %v998 = vmul.f32 %v978, %v960
  %v999 = vmul.f32 %v978, %v961
  %v1000 = vmul.f32 %v978, %v962
  %v1001 = vmul.f32 %v978, %v963
  %v1002 = vmul.f32 %v978, %v964
  %v1003 = vmul.f32 %v978, %v965
  %v1004 = vmul.f32 %v978, %v966
  %v1005 = vmul.f32 %v978, %v967
  %v1006 = vmul.f32 %v978, %v968
  %v1007 = vmul.f32 %v978, %v969
  %v1008 = vmul.f32 %v978, %v970
  %v1009 = vmul.f32 %v978, %v971
  %v1010 = vmul.f32 %v978, %v972
  %v1011 = vmul.f32 %v978, %v973
  %v1012 = vadd.f32 %v782, %v980
  %v1013 = vadd.f32 %v783, %v981
  %v1014 = vadd.f32 %v784, %v982
  %v1015 = vadd.f32 %v785, %v983
  %v1016 = vadd.f32 %v786, %v984
  %v1017 = vadd.f32 %v787, %v985
  %v1018 = vadd.f32 %v788, %v986
  %v1019 = vadd.f32 %v789, %v987
  %v1020 = vadd.f32 %v790, %v988
  %v1021 = vadd.f32 %v791, %v989
  %v1022 = vadd.f32 %v792, %v990
  %v1023 = vadd.f32 %v793, %v991
  %v1024 = vadd.f32 %v794, %v992
  %v1025 = vadd.f32 %v795, %v993
  %v1026 = vadd.f32 %v796, %v994
  %v1027 = vadd.f32 %v797, %v995
  %v1028 = vadd.f32 %v798, %v996
  %v1029 = vadd.f32 %v799, %v997
  %v1030 = vadd.f32 %v800, %v998
  %v1031 = vadd.f32 %v801, %v999
  %v1032 = vadd.f32 %v802, %v1000
  %v1033 = vadd.f32 %v803, %v1001
  %v1034 = vadd.f32 %v804, %v1002
  %v1035 = vadd.f32 %v805, %v1003
  %v1036 = vadd.f32 %v806, %v1004
  %v1037 = vadd.f32 %v807, %v1005
  %v1038 = vadd.f32 %v808, %v1006
  %v1039 = vadd.f32 %v809, %v1007
  %v1040 = vadd.f32 %v810, %v1008
  %v1041 = vadd.f32 %v811, %v1009
  %v1042 = vadd.f32 %v812, %v1010
  %v1043 = vadd.f32 %v813, %v1011
  %v1044 = vxor.u32 %v1012, 2147483648
  %v1045 = vxor.u32 %v1013, 2147483648
  %v1046 = vxor.u32 %v1014, 2147483648
  %v1047 = vxor.u32 %v1015, 2147483648
  %v1048 = vxor.u32 %v1016, 2147483648
  %v1049 = vxor.u32 %v1017, 2147483648
  %v1050 = vxor.u32 %v1018, 2147483648
  %v1051 = vxor.u32 %v1019, 2147483648
  %v1052 = vxor.u32 %v1020, 2147483648
  %v1053 = vxor.u32 %v1021, 2147483648
  %v1054 = vxor.u32 %v1022, 2147483648
  %v1055 = vxor.u32 %v1023, 2147483648
  %v1056 = vxor.u32 %v1024, 2147483648
  %v1057 = vxor.u32 %v1025, 2147483648
  %v1058 = vxor.u32 %v1026, 2147483648
  %v1059 = vxor.u32 %v1027, 2147483648
  %v1060 = vxor.u32 %v1028, 2147483648
  %v1061 = vxor.u32 %v1029, 2147483648
  %v1062 = vxor.u32 %v1030, 2147483648
  %v1063 = vxor.u32 %v1031, 2147483648
  %v1064 = vxor.u32 %v1032, 2147483648
  %v1065 = vxor.u32 %v1033, 2147483648
  %v1066 = vxor.u32 %v1034, 2147483648
  %v1067 = vxor.u32 %v1035, 2147483648
  %v1068 = vxor.u32 %v1036, 2147483648
  %v1069 = vxor.u32 %v1037, 2147483648
  %v1070 = vxor.u32 %v1038, 2147483648
  %v1071 = vxor.u32 %v1039, 2147483648
  %v1072 = vxor.u32 %v1040, 2147483648
  %v1073 = vxor.u32 %v1041, 2147483648
  %v1074 = vxor.u32 %v1042, 2147483648
  %v1075 = vxor.u32 %v1043, 2147483648
  %v1076 = vmul.f32 %v1044, 1.442695
  %v1077 = vpow.pop %v1076
  %v1078 = vmul.f32 %v1045, 1.442695
  %v1079 = vpow.pop %v1078
  %v1080 = vmul.f32 %v1046, 1.442695
  %v1081 = vpow.pop %v1080
  %v1082 = vmul.f32 %v1047, 1.442695
  %v1083 = vpow.pop %v1082
  %v1084 = vmul.f32 %v1048, 1.442695
  %v1085 = vpow.pop %v1084
  %v1086 = vmul.f32 %v1049, 1.442695
  %v1087 = vpow.pop %v1086
  %v1088 = vmul.f32 %v1050, 1.442695
  %v1089 = vpow.pop %v1088
  %v1090 = vmul.f32 %v1051, 1.442695
  %v1091 = vpow.pop %v1090
  %v1092 = vmul.f32 %v1052, 1.442695
  %v1093 = vpow.pop %v1092
  %v1094 = vmul.f32 %v1053, 1.442695
  %v1095 = vpow.pop %v1094
  %v1096 = vmul.f32 %v1054, 1.442695
  %v1097 = vpow.pop %v1096
  %v1098 = vmul.f32 %v1055, 1.442695
  %v1099 = vpow.pop %v1098
  %v1100 = vmul.f32 %v1056, 1.442695
  %v1101 = vpow.pop %v1100
  %v1102 = vmul.f32 %v1057, 1.442695
  %v1103 = vpow.pop %v1102
  %v1104 = vmul.f32 %v1058, 1.442695
  %v1105 = vpow.pop %v1104
  %v1106 = vmul.f32 %v1059, 1.442695
  %v1107 = vpow.pop %v1106
  %v1108 = vmul.f32 %v1060, 1.442695
  %v1109 = vpow.pop %v1108
  %v1110 = vmul.f32 %v1061, 1.442695
  %v1111 = vpow.pop %v1110
  %v1112 = vmul.f32 %v1062, 1.442695
  %v1113 = vpow.pop %v1112
  %v1114 = vmul.f32 %v1063, 1.442695
  %v1115 = vpow.pop %v1114
  %v1116 = vmul.f32 %v1064, 1.442695
  %v1117 = vpow.pop %v1116
  %v1118 = vmul.f32 %v1065, 1.442695
  %v1119 = vpow.pop %v1118
  %v1120 = vmul.f32 %v1066, 1.442695
  %v1121 = vpow.pop %v1120
  %v1122 = vmul.f32 %v1067, 1.442695
  %v1123 = vpow.pop %v1122
  %v1124 = vmul.f32 %v1068, 1.442695
  %v1125 = vpow.pop %v1124
  %v1126 = vmul.f32 %v1069, 1.442695
  %v1127 = vpow.pop %v1126
  %v1128 = vmul.f32 %v1070, 1.442695
  %v1129 = vpow.pop %v1128
  %v1130 = vmul.f32 %v1071, 1.442695
  %v1131 = vpow.pop %v1130
  %v1132 = vmul.f32 %v1072, 1.442695
  %v1133 = vpow.pop %v1132
  %v1134 = vmul.f32 %v1073, 1.442695
  %v1135 = vpow.pop %v1134
  %v1136 = vmul.f32 %v1074, 1.442695
  %v1137 = vpow.pop %v1136
  %v1138 = vmul.f32 %v1075, 1.442695
  %v1139 = vpow.pop %v1138
  %v1140 = vadd.f32 %v1077, 1.0
  %v1141 = vadd.f32 %v1079, 1.0
  %v1142 = vadd.f32 %v1081, 1.0
  %v1143 = vadd.f32 %v1083, 1.0
  %v1144 = vadd.f32 %v1085, 1.0
  %v1145 = vadd.f32 %v1087, 1.0
  %v1146 = vadd.f32 %v1089, 1.0
  %v1147 = vadd.f32 %v1091, 1.0
  %v1148 = vadd.f32 %v1093, 1.0
  %v1149 = vadd.f32 %v1095, 1.0
  %v1150 = vadd.f32 %v1097, 1.0
  %v1151 = vadd.f32 %v1099, 1.0
  %v1152 = vadd.f32 %v1101, 1.0
  %v1153 = vadd.f32 %v1103, 1.0
  %v1154 = vadd.f32 %v1105, 1.0
  %v1155 = vadd.f32 %v1107, 1.0
  %v1156 = vadd.f32 %v1109, 1.0
  %v1157 = vadd.f32 %v1111, 1.0
  %v1158 = vadd.f32 %v1113, 1.0
  %v1159 = vadd.f32 %v1115, 1.0
  %v1160 = vadd.f32 %v1117, 1.0
  %v1161 = vadd.f32 %v1119, 1.0
  %v1162 = vadd.f32 %v1121, 1.0
  %v1163 = vadd.f32 %v1123, 1.0
  %v1164 = vadd.f32 %v1125, 1.0
  %v1165 = vadd.f32 %v1127, 1.0
  %v1166 = vadd.f32 %v1129, 1.0
  %v1167 = vadd.f32 %v1131, 1.0
  %v1168 = vadd.f32 %v1133, 1.0
  %v1169 = vadd.f32 %v1135, 1.0
  %v1170 = vadd.f32 %v1137, 1.0
  %v1171 = vadd.f32 %v1139, 1.0
  %v1172 = vrcp.pop %v1140
  %v1173 = vmul.f32 1.0, %v1172
  %v1174 = vrcp.pop %v1141
  %v1175 = vmul.f32 1.0, %v1174
  %v1176 = vrcp.pop %v1142
  %v1177 = vmul.f32 1.0, %v1176
  %v1178 = vrcp.pop %v1143
  %v1179 = vmul.f32 1.0, %v1178
  %v1180 = vrcp.pop %v1144
  %v1181 = vmul.f32 1.0, %v1180
  %v1182 = vrcp.pop %v1145
  %v1183 = vmul.f32 1.0, %v1182
  %v1184 = vrcp.pop %v1146
  %v1185 = vmul.f32 1.0, %v1184
  %v1186 = vrcp.pop %v1147
  %v1187 = vmul.f32 1.0, %v1186
  %v1188 = vrcp.pop %v1148
  %v1189 = vmul.f32 1.0, %v1188
  %v1190 = vrcp.pop %v1149
  %v1191 = vmul.f32 1.0, %v1190
  %v1192 = vrcp.pop %v1150
  %v1193 = vmul.f32 1.0, %v1192
  %v1194 = vrcp.pop %v1151
  %v1195 = vmul.f32 1.0, %v1194
  %v1196 = vrcp.pop %v1152
  %v1197 = vmul.f32 1.0, %v1196
  %v1198 = vrcp.pop %v1153
  %v1199 = vmul.f32 1.0, %v1198
  %v1200 = vrcp.pop %v1154
  %v1201 = vmul.f32 1.0, %v1200
  %v1202 = vrcp.pop %v1155
  %v1203 = vmul.f32 1.0, %v1202
  %v1204 = vrcp.pop %v1156
  %v1205 = vmul.f32 1.0, %v1204
  %v1206 = vrcp.pop %v1157
  %v1207 = vmul.f32 1.0, %v1206
  %v1208 = vrcp.pop %v1158
  %v1209 = vmul.f32 1.0, %v1208
  %v1210 = vrcp.pop %v1159
  %v1211 = vmul.f32 1.0, %v1210
  %v1212 = vrcp.pop %v1160
  %v1213 = vmul.f32 1.0, %v1212
  %v1214 = vrcp.pop %v1161
  %v1215 = vmul.f32 1.0, %v1214
  %v1216 = vrcp.pop %v1162
  %v1217 = vmul.f32 1.0, %v1216
  %v1218 = vrcp.pop %v1163
  %v1219 = vmul.f32 1.0, %v1218
  %v1220 = vrcp.pop %v1164
  %v1221 = vmul.f32 1.0, %v1220
  %v1222 = vrcp.pop %v1165
  %v1223 = vmul.f32 1.0, %v1222
  %v1224 = vrcp.pop %v1166
  %v1225 = vmul.f32 1.0, %v1224
  %v1226 = vrcp.pop %v1167
  %v1227 = vmul.f32 1.0, %v1226
  %v1228 = vrcp.pop %v1168
  %v1229 = vmul.f32 1.0, %v1228
  %v1230 = vrcp.pop %v1169
  %v1231 = vmul.f32 1.0, %v1230
  %v1232 = vrcp.pop %v1170
  %v1233 = vmul.f32 1.0, %v1232
  %v1234 = vrcp.pop %v1171
  %v1235 = vmul.f32 1.0, %v1234
  %v1236 = vtanh.pop %v782
  %v1237 = vtanh.pop %v783
  %v1238 = vtanh.pop %v784
  %v1239 = vtanh.pop %v785
  %v1240 = vtanh.pop %v786
  %v1241 = vtanh.pop %v787
  %v1242 = vtanh.pop %v788
  %v1243 = vtanh.pop %v789
  %v1244 = vtanh.pop %v790
  %v1245 = vtanh.pop %v791
  %v1246 = vtanh.pop %v792
  %v1247 = vtanh.pop %v793
  %v1248 = vtanh.pop %v794
  %v1249 = vtanh.pop %v795
  %v1250 = vtanh.pop %v796
  %v1251 = vtanh.pop %v797
  %v1252 = vtanh.pop %v798
  %v1253 = vtanh.pop %v799
  %v1254 = vtanh.pop %v800
  %v1255 = vtanh.pop %v801
  %v1256 = vtanh.pop %v802
  %v1257 = vtanh.pop %v803
  %v1258 = vtanh.pop %v804
  %v1259 = vtanh.pop %v805
  %v1260 = vtanh.pop %v806
  %v1261 = vtanh.pop %v807
  %v1262 = vtanh.pop %v808
  %v1263 = vtanh.pop %v809
  %v1264 = vtanh.pop %v810
  %v1265 = vtanh.pop %v811
  %v1266 = vtanh.pop %v812
  %v1267 = vtanh.pop %v813
  %v1268 = vmul.f32 %v1173, %v847
  %v1269 = vmul.f32 %v1175, %v849
  %v1270 = vmul.f32 %v1177, %v851
  %v1271 = vmul.f32 %v1179, %v853
  %v1272 = vmul.f32 %v1181, %v855
  %v1273 = vmul.f32 %v1183, %v857
  %v1274 = vmul.f32 %v1185, %v859
  %v1275 = vmul.f32 %v1187, %v861
  %v1276 = vmul.f32 %v1189, %v863
  %v1277 = vmul.f32 %v1191, %v865
  %v1278 = vmul.f32 %v1193, %v867
  %v1279 = vmul.f32 %v1195, %v869
  %v1280 = vmul.f32 %v1197, %v871
  %v1281 = vmul.f32 %v1199, %v873
  %v1282 = vmul.f32 %v1201, %v875
  %v1283 = vmul.f32 %v1203, %v877
  %v1284 = vmul.f32 %v1205, %v879
  %v1285 = vmul.f32 %v1207, %v881
  %v1286 = vmul.f32 %v1209, %v883
  %v1287 = vmul.f32 %v1211, %v885
  %v1288 = vmul.f32 %v1213, %v887
  %v1289 = vmul.f32 %v1215, %v889
  %v1290 = vmul.f32 %v1217, %v891
  %v1291 = vmul.f32 %v1219, %v893
  %v1292 = vmul.f32 %v1221, %v895
  %v1293 = vmul.f32 %v1223, %v897
  %v1294 = vmul.f32 %v1225, %v899
  %v1295 = vmul.f32 %v1227, %v901
  %v1296 = vmul.f32 %v1229, %v903
  %v1297 = vmul.f32 %v1231, %v905
  %v1298 = vmul.f32 %v1233, %v907
  %v1299 = vmul.f32 %v1235, %v909
  %1332 = vrot.lane.b32.xlu0 %v1236, 64
  %v1333 = vpop.permute.xlu0 %1332
  %1334 = vrot.lane.b32.xlu0 %v1237, 64
  %v1335 = vpop.permute.xlu0 %1334
  %1336 = vrot.lane.b32.xlu0 %v1238, 64
  %v1337 = vpop.permute.xlu0 %1336
  %1338 = vrot.lane.b32.xlu0 %v1239, 64
  %v1339 = vpop.permute.xlu0 %1338
  %1340 = vrot.lane.b32.xlu0 %v1240, 64
  %v1341 = vpop.permute.xlu0 %1340
  %1342 = vrot.lane.b32.xlu0 %v1241, 64
  %v1343 = vpop.permute.xlu0 %1342
  %1344 = vrot.lane.b32.xlu0 %v1242, 64
  %v1345 = vpop.permute.xlu0 %1344
  %1346 = vrot.lane.b32.xlu0 %v1243, 64
  %v1347 = vpop.permute.xlu0 %1346
  %1348 = vrot.lane.b32.xlu0 %v1244, 64
  %v1349 = vpop.permute.xlu0 %1348
  %1350 = vrot.lane.b32.xlu0 %v1245, 64
  %v1351 = vpop.permute.xlu0 %1350
  %1352 = vrot.lane.b32.xlu0 %v1246, 64
  %v1353 = vpop.permute.xlu0 %1352
  %1354 = vrot.lane.b32.xlu0 %v1247, 64
  %v1355 = vpop.permute.xlu0 %1354
  %1356 = vrot.lane.b32.xlu0 %v1248, 64
  %v1357 = vpop.permute.xlu0 %1356
  %1358 = vrot.lane.b32.xlu0 %v1249, 64
  %v1359 = vpop.permute.xlu0 %1358
  %1360 = vrot.lane.b32.xlu0 %v1250, 64
  %v1361 = vpop.permute.xlu0 %1360
  %1362 = vrot.lane.b32.xlu0 %v1251, 64
  %v1363 = vpop.permute.xlu0 %1362
  %1364 = vrot.lane.b32.xlu0 %v1252, 64
  %v1365 = vpop.permute.xlu0 %1364
  %1366 = vrot.lane.b32.xlu0 %v1253, 64
  %v1367 = vpop.permute.xlu0 %1366
  %1368 = vrot.lane.b32.xlu0 %v1254, 64
  %v1369 = vpop.permute.xlu0 %1368
  %1370 = vrot.lane.b32.xlu0 %v1255, 64
  %v1371 = vpop.permute.xlu0 %1370
  %1372 = vrot.lane.b32.xlu0 %v1256, 64
  %v1373 = vpop.permute.xlu0 %1372
  %1374 = vrot.lane.b32.xlu0 %v1257, 64
  %v1375 = vpop.permute.xlu0 %1374
  %1376 = vrot.lane.b32.xlu0 %v1258, 64
  %v1377 = vpop.permute.xlu0 %1376
  %1378 = vrot.lane.b32.xlu0 %v1259, 64
  %v1379 = vpop.permute.xlu0 %1378
  %1380 = vrot.lane.b32.xlu0 %v1260, 64
  %v1381 = vpop.permute.xlu0 %1380
  %1382 = vrot.lane.b32.xlu0 %v1261, 64
  %v1383 = vpop.permute.xlu0 %1382
  %1384 = vrot.lane.b32.xlu0 %v1262, 64
  %v1385 = vpop.permute.xlu0 %1384
  %1386 = vrot.lane.b32.xlu0 %v1263, 64
  %v1387 = vpop.permute.xlu0 %1386
  %1388 = vrot.lane.b32.xlu0 %v1264, 64
  %v1389 = vpop.permute.xlu0 %1388
  %1390 = vrot.lane.b32.xlu0 %v1265, 64
  %v1391 = vpop.permute.xlu0 %1390
  %1392 = vrot.lane.b32.xlu0 %v1266, 64
  %v1393 = vpop.permute.xlu0 %1392
  %1394 = vrot.lane.b32.xlu0 %v1267, 64
  %v1395 = vpop.permute.xlu0 %1394
  %v1428 = vmul.f32 %v1173, %v1333
  %v1429 = vmul.f32 %v1175, %v1335
  %v1430 = vmul.f32 %v1177, %v1337
  %v1431 = vmul.f32 %v1179, %v1339
  %v1432 = vmul.f32 %v1181, %v1341
  %v1433 = vmul.f32 %v1183, %v1343
  %v1434 = vmul.f32 %v1185, %v1345
  %v1435 = vmul.f32 %v1187, %v1347
  %v1436 = vmul.f32 %v1189, %v1349
  %v1437 = vmul.f32 %v1191, %v1351
  %v1438 = vmul.f32 %v1193, %v1353
  %v1439 = vmul.f32 %v1195, %v1355
  %v1440 = vmul.f32 %v1197, %v1357
  %v1441 = vmul.f32 %v1199, %v1359
  %v1442 = vmul.f32 %v1201, %v1361
  %v1443 = vmul.f32 %v1203, %v1363
  %v1444 = vmul.f32 %v1205, %v1365
  %v1445 = vmul.f32 %v1207, %v1367
  %v1446 = vmul.f32 %v1209, %v1369
  %v1447 = vmul.f32 %v1211, %v1371
  %v1448 = vmul.f32 %v1213, %v1373
  %v1449 = vmul.f32 %v1215, %v1375
  %v1450 = vmul.f32 %v1217, %v1377
  %v1451 = vmul.f32 %v1219, %v1379
  %v1452 = vmul.f32 %v1221, %v1381
  %v1453 = vmul.f32 %v1223, %v1383
  %v1454 = vmul.f32 %v1225, %v1385
  %v1455 = vmul.f32 %v1227, %v1387
  %v1456 = vmul.f32 %v1229, %v1389
  %v1457 = vmul.f32 %v1231, %v1391
  %v1458 = vmul.f32 %v1233, %v1393
  %v1459 = vmul.f32 %v1235, %v1395
  %1492 = vrot.lane.b32.xlu0 %v1428, 32
  %v1493 = vpop.permute.xlu0 %1492
  %1494 = vrot.lane.b32.xlu0 %v1429, 32
  %v1495 = vpop.permute.xlu0 %1494
  %1496 = vrot.lane.b32.xlu0 %v1430, 32
  %v1497 = vpop.permute.xlu0 %1496
  %1498 = vrot.lane.b32.xlu0 %v1431, 32
  %v1499 = vpop.permute.xlu0 %1498
  %1500 = vrot.lane.b32.xlu0 %v1432, 32
  %v1501 = vpop.permute.xlu0 %1500
  %1502 = vrot.lane.b32.xlu0 %v1433, 32
  %v1503 = vpop.permute.xlu0 %1502
  %1504 = vrot.lane.b32.xlu0 %v1434, 32
  %v1505 = vpop.permute.xlu0 %1504
  %1506 = vrot.lane.b32.xlu0 %v1435, 32
  %v1507 = vpop.permute.xlu0 %1506
  %1508 = vrot.lane.b32.xlu0 %v1436, 32
  %v1509 = vpop.permute.xlu0 %1508
  %1510 = vrot.lane.b32.xlu0 %v1437, 32
  %v1511 = vpop.permute.xlu0 %1510
  %1512 = vrot.lane.b32.xlu0 %v1438, 32
  %v1513 = vpop.permute.xlu0 %1512
  %1514 = vrot.lane.b32.xlu0 %v1439, 32
  %v1515 = vpop.permute.xlu0 %1514
  %1516 = vrot.lane.b32.xlu0 %v1440, 32
  %v1517 = vpop.permute.xlu0 %1516
  %1518 = vrot.lane.b32.xlu0 %v1441, 32
  %v1519 = vpop.permute.xlu0 %1518
  %1520 = vrot.lane.b32.xlu0 %v1442, 32
  %v1521 = vpop.permute.xlu0 %1520
  %1522 = vrot.lane.b32.xlu0 %v1443, 32
  %v1523 = vpop.permute.xlu0 %1522
  %1524 = vrot.lane.b32.xlu0 %v1444, 32
  %v1525 = vpop.permute.xlu0 %1524
  %1526 = vrot.lane.b32.xlu0 %v1445, 32
  %v1527 = vpop.permute.xlu0 %1526
  %1528 = vrot.lane.b32.xlu0 %v1446, 32
  %v1529 = vpop.permute.xlu0 %1528
  %1530 = vrot.lane.b32.xlu0 %v1447, 32
  %v1531 = vpop.permute.xlu0 %1530
  %1532 = vrot.lane.b32.xlu0 %v1448, 32
  %v1533 = vpop.permute.xlu0 %1532
  %1534 = vrot.lane.b32.xlu0 %v1449, 32
  %v1535 = vpop.permute.xlu0 %1534
  %1536 = vrot.lane.b32.xlu0 %v1450, 32
  %v1537 = vpop.permute.xlu0 %1536
  %1538 = vrot.lane.b32.xlu0 %v1451, 32
  %v1539 = vpop.permute.xlu0 %1538
  %1540 = vrot.lane.b32.xlu0 %v1452, 32
  %v1541 = vpop.permute.xlu0 %1540
  %1542 = vrot.lane.b32.xlu0 %v1453, 32
  %v1543 = vpop.permute.xlu0 %1542
  %1544 = vrot.lane.b32.xlu0 %v1454, 32
  %v1545 = vpop.permute.xlu0 %1544
  %1546 = vrot.lane.b32.xlu0 %v1455, 32
  %v1547 = vpop.permute.xlu0 %1546
  %1548 = vrot.lane.b32.xlu0 %v1456, 32
  %v1549 = vpop.permute.xlu0 %1548
  %1550 = vrot.lane.b32.xlu0 %v1457, 32
  %v1551 = vpop.permute.xlu0 %1550
  %1552 = vrot.lane.b32.xlu0 %v1458, 32
  %v1553 = vpop.permute.xlu0 %1552
  %1554 = vrot.lane.b32.xlu0 %v1459, 32
  %v1555 = vpop.permute.xlu0 %1554
  %v1588 = vadd.f32 %v1268, %v1493
  %v1589 = vadd.f32 %v1269, %v1495
  %v1590 = vadd.f32 %v1270, %v1497
  %v1591 = vadd.f32 %v1271, %v1499
  %v1592 = vadd.f32 %v1272, %v1501
  %v1593 = vadd.f32 %v1273, %v1503
  %v1594 = vadd.f32 %v1274, %v1505
  %v1595 = vadd.f32 %v1275, %v1507
  %v1596 = vadd.f32 %v1276, %v1509
  %v1597 = vadd.f32 %v1277, %v1511
  %v1598 = vadd.f32 %v1278, %v1513
  %v1599 = vadd.f32 %v1279, %v1515
  %v1600 = vadd.f32 %v1280, %v1517
  %v1601 = vadd.f32 %v1281, %v1519
  %v1602 = vadd.f32 %v1282, %v1521
  %v1603 = vadd.f32 %v1283, %v1523
  %v1604 = vadd.f32 %v1284, %v1525
  %v1605 = vadd.f32 %v1285, %v1527
  %v1606 = vadd.f32 %v1286, %v1529
  %v1607 = vadd.f32 %v1287, %v1531
  %v1608 = vadd.f32 %v1288, %v1533
  %v1609 = vadd.f32 %v1289, %v1535
  %v1610 = vadd.f32 %v1290, %v1537
  %v1611 = vadd.f32 %v1291, %v1539
  %v1612 = vadd.f32 %v1292, %v1541
  %v1613 = vadd.f32 %v1293, %v1543
  %v1614 = vadd.f32 %v1294, %v1545
  %v1615 = vadd.f32 %v1295, %v1547
  %v1616 = vadd.f32 %v1296, %v1549
  %v1617 = vadd.f32 %v1297, %v1551
  %v1618 = vadd.f32 %v1298, %v1553
  %v1619 = vadd.f32 %v1299, %v1555
  %1652 = vrot.lane.b32.xlu0 %v1588, 32
  %v1653 = vpop.permute.xlu0 %1652
  %1654 = vrot.lane.b32.xlu0 %v1589, 32
  %v1655 = vpop.permute.xlu0 %1654
  %1656 = vrot.lane.b32.xlu0 %v1590, 32
  %v1657 = vpop.permute.xlu0 %1656
  %1658 = vrot.lane.b32.xlu0 %v1591, 32
  %v1659 = vpop.permute.xlu0 %1658
  %1660 = vrot.lane.b32.xlu0 %v1592, 32
  %v1661 = vpop.permute.xlu0 %1660
  %1662 = vrot.lane.b32.xlu0 %v1593, 32
  %v1663 = vpop.permute.xlu0 %1662
  %1664 = vrot.lane.b32.xlu0 %v1594, 32
  %v1665 = vpop.permute.xlu0 %1664
  %1666 = vrot.lane.b32.xlu0 %v1595, 32
  %v1667 = vpop.permute.xlu0 %1666
  %1668 = vrot.lane.b32.xlu0 %v1596, 32
  %v1669 = vpop.permute.xlu0 %1668
  %1670 = vrot.lane.b32.xlu0 %v1597, 32
  %v1671 = vpop.permute.xlu0 %1670
  %1672 = vrot.lane.b32.xlu0 %v1598, 32
  %v1673 = vpop.permute.xlu0 %1672
  %1674 = vrot.lane.b32.xlu0 %v1599, 32
  %v1675 = vpop.permute.xlu0 %1674
  %1676 = vrot.lane.b32.xlu0 %v1600, 32
  %v1677 = vpop.permute.xlu0 %1676
  %1678 = vrot.lane.b32.xlu0 %v1601, 32
  %v1679 = vpop.permute.xlu0 %1678
  %1680 = vrot.lane.b32.xlu0 %v1602, 32
  %v1681 = vpop.permute.xlu0 %1680
  %1682 = vrot.lane.b32.xlu0 %v1603, 32
  %v1683 = vpop.permute.xlu0 %1682
  %1684 = vrot.lane.b32.xlu0 %v1604, 32
  %v1685 = vpop.permute.xlu0 %1684
  %1686 = vrot.lane.b32.xlu0 %v1605, 32
  %v1687 = vpop.permute.xlu0 %1686
  %1688 = vrot.lane.b32.xlu0 %v1606, 32
  %v1689 = vpop.permute.xlu0 %1688
  %1690 = vrot.lane.b32.xlu0 %v1607, 32
  %v1691 = vpop.permute.xlu0 %1690
  %1692 = vrot.lane.b32.xlu0 %v1608, 32
  %v1693 = vpop.permute.xlu0 %1692
  %1694 = vrot.lane.b32.xlu0 %v1609, 32
  %v1695 = vpop.permute.xlu0 %1694
  %1696 = vrot.lane.b32.xlu0 %v1610, 32
  %v1697 = vpop.permute.xlu0 %1696
  %1698 = vrot.lane.b32.xlu0 %v1611, 32
  %v1699 = vpop.permute.xlu0 %1698
  %1700 = vrot.lane.b32.xlu0 %v1612, 32
  %v1701 = vpop.permute.xlu0 %1700
  %1702 = vrot.lane.b32.xlu0 %v1613, 32
  %v1703 = vpop.permute.xlu0 %1702
  %1704 = vrot.lane.b32.xlu0 %v1614, 32
  %v1705 = vpop.permute.xlu0 %1704
  %1706 = vrot.lane.b32.xlu0 %v1615, 32
  %v1707 = vpop.permute.xlu0 %1706
  %1708 = vrot.lane.b32.xlu0 %v1616, 32
  %v1709 = vpop.permute.xlu0 %1708
  %1710 = vrot.lane.b32.xlu0 %v1617, 32
  %v1711 = vpop.permute.xlu0 %1710
  %1712 = vrot.lane.b32.xlu0 %v1618, 32
  %v1713 = vpop.permute.xlu0 %1712
  %1714 = vrot.lane.b32.xlu0 %v1619, 32
  %v1715 = vpop.permute.xlu0 %1714
  %v1748 = vmul.f32 %v978, %v1653
  %v1749 = vmul.f32 %v978, %v1655
  %v1750 = vmul.f32 %v978, %v1657
  %v1751 = vmul.f32 %v978, %v1659
  %v1752 = vmul.f32 %v978, %v1661
  %v1753 = vmul.f32 %v978, %v1663
  %v1754 = vmul.f32 %v978, %v1665
  %v1755 = vmul.f32 %v978, %v1667
  %v1756 = vmul.f32 %v978, %v1669
  %v1757 = vmul.f32 %v978, %v1671
  %v1758 = vmul.f32 %v978, %v1673
  %v1759 = vmul.f32 %v978, %v1675
  %v1760 = vmul.f32 %v978, %v1677
  %v1761 = vmul.f32 %v978, %v1679
  %v1762 = vmul.f32 %v978, %v1681
  %v1763 = vmul.f32 %v978, %v1683
  %v1764 = vmul.f32 %v978, %v1685
  %v1765 = vmul.f32 %v978, %v1687
  %v1766 = vmul.f32 %v978, %v1689
  %v1767 = vmul.f32 %v978, %v1691
  %v1768 = vmul.f32 %v978, %v1693
  %v1769 = vmul.f32 %v978, %v1695
  %v1770 = vmul.f32 %v978, %v1697
  %v1771 = vmul.f32 %v978, %v1699
  %v1772 = vmul.f32 %v978, %v1701
  %v1773 = vmul.f32 %v978, %v1703
  %v1774 = vmul.f32 %v978, %v1705
  %v1775 = vmul.f32 %v978, %v1707
  %v1776 = vmul.f32 %v978, %v1709
  %v1777 = vmul.f32 %v978, %v1711
  %v1778 = vmul.f32 %v978, %v1713
  %v1779 = vmul.f32 %v978, %v1715
  %1812 = vrot.lane.b32.xlu0 %v1748, 32
  %v1813 = vpop.permute.xlu0 %1812
  %1814 = vrot.lane.b32.xlu0 %v1749, 32
  %v1815 = vpop.permute.xlu0 %1814
  %1816 = vrot.lane.b32.xlu0 %v1750, 32
  %v1817 = vpop.permute.xlu0 %1816
  %1818 = vrot.lane.b32.xlu0 %v1751, 32
  %v1819 = vpop.permute.xlu0 %1818
  %1820 = vrot.lane.b32.xlu0 %v1752, 32
  %v1821 = vpop.permute.xlu0 %1820
  %1822 = vrot.lane.b32.xlu0 %v1753, 32
  %v1823 = vpop.permute.xlu0 %1822
  %1824 = vrot.lane.b32.xlu0 %v1754, 32
  %v1825 = vpop.permute.xlu0 %1824
  %1826 = vrot.lane.b32.xlu0 %v1755, 32
  %v1827 = vpop.permute.xlu0 %1826
  %1828 = vrot.lane.b32.xlu0 %v1756, 32
  %v1829 = vpop.permute.xlu0 %1828
  %1830 = vrot.lane.b32.xlu0 %v1757, 32
  %v1831 = vpop.permute.xlu0 %1830
  %1832 = vrot.lane.b32.xlu0 %v1758, 32
  %v1833 = vpop.permute.xlu0 %1832
  %1834 = vrot.lane.b32.xlu0 %v1759, 32
  %v1835 = vpop.permute.xlu0 %1834
  %1836 = vrot.lane.b32.xlu0 %v1760, 32
  %v1837 = vpop.permute.xlu0 %1836
  %1838 = vrot.lane.b32.xlu0 %v1761, 32
  %v1839 = vpop.permute.xlu0 %1838
  %1840 = vrot.lane.b32.xlu0 %v1762, 32
  %v1841 = vpop.permute.xlu0 %1840
  %1842 = vrot.lane.b32.xlu0 %v1763, 32
  %v1843 = vpop.permute.xlu0 %1842
  %1844 = vrot.lane.b32.xlu0 %v1764, 32
  %v1845 = vpop.permute.xlu0 %1844
  %1846 = vrot.lane.b32.xlu0 %v1765, 32
  %v1847 = vpop.permute.xlu0 %1846
  %1848 = vrot.lane.b32.xlu0 %v1766, 32
  %v1849 = vpop.permute.xlu0 %1848
  %1850 = vrot.lane.b32.xlu0 %v1767, 32
  %v1851 = vpop.permute.xlu0 %1850
  %1852 = vrot.lane.b32.xlu0 %v1768, 32
  %v1853 = vpop.permute.xlu0 %1852
  %1854 = vrot.lane.b32.xlu0 %v1769, 32
  %v1855 = vpop.permute.xlu0 %1854
  %1856 = vrot.lane.b32.xlu0 %v1770, 32
  %v1857 = vpop.permute.xlu0 %1856
  %1858 = vrot.lane.b32.xlu0 %v1771, 32
  %v1859 = vpop.permute.xlu0 %1858
  %1860 = vrot.lane.b32.xlu0 %v1772, 32
  %v1861 = vpop.permute.xlu0 %1860
  %1862 = vrot.lane.b32.xlu0 %v1773, 32
  %v1863 = vpop.permute.xlu0 %1862
  %1864 = vrot.lane.b32.xlu0 %v1774, 32
  %v1865 = vpop.permute.xlu0 %1864
  %1866 = vrot.lane.b32.xlu0 %v1775, 32
  %v1867 = vpop.permute.xlu0 %1866
  %1868 = vrot.lane.b32.xlu0 %v1776, 32
  %v1869 = vpop.permute.xlu0 %1868
  %1870 = vrot.lane.b32.xlu0 %v1777, 32
  %v1871 = vpop.permute.xlu0 %1870
  %1872 = vrot.lane.b32.xlu0 %v1778, 32
  %v1873 = vpop.permute.xlu0 %1872
  %1874 = vrot.lane.b32.xlu0 %v1779, 32
  %v1875 = vpop.permute.xlu0 %1874
  %v1908 = vadd.f32 %v782, %v1813
  %v1909 = vadd.f32 %v783, %v1815
  %v1910 = vadd.f32 %v784, %v1817
  %v1911 = vadd.f32 %v785, %v1819
  %v1912 = vadd.f32 %v786, %v1821
  %v1913 = vadd.f32 %v787, %v1823
  %v1914 = vadd.f32 %v788, %v1825
  %v1915 = vadd.f32 %v789, %v1827
  %v1916 = vadd.f32 %v790, %v1829
  %v1917 = vadd.f32 %v791, %v1831
  %v1918 = vadd.f32 %v792, %v1833
  %v1919 = vadd.f32 %v793, %v1835
  %v1920 = vadd.f32 %v794, %v1837
  %v1921 = vadd.f32 %v795, %v1839
  %v1922 = vadd.f32 %v796, %v1841
  %v1923 = vadd.f32 %v797, %v1843
  %v1924 = vadd.f32 %v798, %v1845
  %v1925 = vadd.f32 %v799, %v1847
  %v1926 = vadd.f32 %v800, %v1849
  %v1927 = vadd.f32 %v801, %v1851
  %v1928 = vadd.f32 %v802, %v1853
  %v1929 = vadd.f32 %v803, %v1855
  %v1930 = vadd.f32 %v804, %v1857
  %v1931 = vadd.f32 %v805, %v1859
  %v1932 = vadd.f32 %v806, %v1861
  %v1933 = vadd.f32 %v807, %v1863
  %v1934 = vadd.f32 %v808, %v1865
  %v1935 = vadd.f32 %v809, %v1867
  %v1936 = vadd.f32 %v810, %v1869
  %v1937 = vadd.f32 %v811, %v1871
  %v1938 = vadd.f32 %v812, %v1873
  %v1939 = vadd.f32 %v813, %v1875
  %v1940 = vxor.u32 %v1908, 2147483648
  %v1941 = vxor.u32 %v1909, 2147483648
  %v1942 = vxor.u32 %v1910, 2147483648
  %v1943 = vxor.u32 %v1911, 2147483648
  %v1944 = vxor.u32 %v1912, 2147483648
  %v1945 = vxor.u32 %v1913, 2147483648
  %v1946 = vxor.u32 %v1914, 2147483648
  %v1947 = vxor.u32 %v1915, 2147483648
  %v1948 = vxor.u32 %v1916, 2147483648
  %v1949 = vxor.u32 %v1917, 2147483648
  %v1950 = vxor.u32 %v1918, 2147483648
  %v1951 = vxor.u32 %v1919, 2147483648
  %v1952 = vxor.u32 %v1920, 2147483648
  %v1953 = vxor.u32 %v1921, 2147483648
  %v1954 = vxor.u32 %v1922, 2147483648
  %v1955 = vxor.u32 %v1923, 2147483648
  %v1956 = vxor.u32 %v1924, 2147483648
  %v1957 = vxor.u32 %v1925, 2147483648
  %v1958 = vxor.u32 %v1926, 2147483648
  %v1959 = vxor.u32 %v1927, 2147483648
  %v1960 = vxor.u32 %v1928, 2147483648
  %v1961 = vxor.u32 %v1929, 2147483648
  %v1962 = vxor.u32 %v1930, 2147483648
  %v1963 = vxor.u32 %v1931, 2147483648
  %v1964 = vxor.u32 %v1932, 2147483648
  %v1965 = vxor.u32 %v1933, 2147483648
  %v1966 = vxor.u32 %v1934, 2147483648
  %v1967 = vxor.u32 %v1935, 2147483648
  %v1968 = vxor.u32 %v1936, 2147483648
  %v1969 = vxor.u32 %v1937, 2147483648
  %v1970 = vxor.u32 %v1938, 2147483648
  %v1971 = vxor.u32 %v1939, 2147483648
  %v1972 = vmul.f32 %v1940, 1.442695
  %v1973 = vpow.pop %v1972
  %v1974 = vmul.f32 %v1941, 1.442695
  %v1975 = vpow.pop %v1974
  %v1976 = vmul.f32 %v1942, 1.442695
  %v1977 = vpow.pop %v1976
  %v1978 = vmul.f32 %v1943, 1.442695
  %v1979 = vpow.pop %v1978
  %v1980 = vmul.f32 %v1944, 1.442695
  %v1981 = vpow.pop %v1980
  %v1982 = vmul.f32 %v1945, 1.442695
  %v1983 = vpow.pop %v1982
  %v1984 = vmul.f32 %v1946, 1.442695
  %v1985 = vpow.pop %v1984
  %v1986 = vmul.f32 %v1947, 1.442695
  %v1987 = vpow.pop %v1986
  %v1988 = vmul.f32 %v1948, 1.442695
  %v1989 = vpow.pop %v1988
  %v1990 = vmul.f32 %v1949, 1.442695
  %v1991 = vpow.pop %v1990
  %v1992 = vmul.f32 %v1950, 1.442695
  %v1993 = vpow.pop %v1992
  %v1994 = vmul.f32 %v1951, 1.442695
  %v1995 = vpow.pop %v1994
  %v1996 = vmul.f32 %v1952, 1.442695
  %v1997 = vpow.pop %v1996
  %v1998 = vmul.f32 %v1953, 1.442695
  %v1999 = vpow.pop %v1998
  %v2000 = vmul.f32 %v1954, 1.442695
  %v2001 = vpow.pop %v2000
  %v2002 = vmul.f32 %v1955, 1.442695
  %v2003 = vpow.pop %v2002
  %v2004 = vmul.f32 %v1956, 1.442695
  %v2005 = vpow.pop %v2004
  %v2006 = vmul.f32 %v1957, 1.442695
  %v2007 = vpow.pop %v2006
  %v2008 = vmul.f32 %v1958, 1.442695
  %v2009 = vpow.pop %v2008
  %v2010 = vmul.f32 %v1959, 1.442695
  %v2011 = vpow.pop %v2010
  %v2012 = vmul.f32 %v1960, 1.442695
  %v2013 = vpow.pop %v2012
  %v2014 = vmul.f32 %v1961, 1.442695
  %v2015 = vpow.pop %v2014
  %v2016 = vmul.f32 %v1962, 1.442695
  %v2017 = vpow.pop %v2016
  %v2018 = vmul.f32 %v1963, 1.442695
  %v2019 = vpow.pop %v2018
  %v2020 = vmul.f32 %v1964, 1.442695
  %v2021 = vpow.pop %v2020
  %v2022 = vmul.f32 %v1965, 1.442695
  %v2023 = vpow.pop %v2022
  %v2024 = vmul.f32 %v1966, 1.442695
  %v2025 = vpow.pop %v2024
  %v2026 = vmul.f32 %v1967, 1.442695
  %v2027 = vpow.pop %v2026
  %v2028 = vmul.f32 %v1968, 1.442695
  %v2029 = vpow.pop %v2028
  %v2030 = vmul.f32 %v1969, 1.442695
  %v2031 = vpow.pop %v2030
  %v2032 = vmul.f32 %v1970, 1.442695
  %v2033 = vpow.pop %v2032
  %v2034 = vmul.f32 %v1971, 1.442695
  %v2035 = vpow.pop %v2034
  %v2036 = vadd.f32 %v1973, 1.0
  %v2037 = vadd.f32 %v1975, 1.0
  %v2038 = vadd.f32 %v1977, 1.0
  %v2039 = vadd.f32 %v1979, 1.0
  %v2040 = vadd.f32 %v1981, 1.0
  %v2041 = vadd.f32 %v1983, 1.0
  %v2042 = vadd.f32 %v1985, 1.0
  %v2043 = vadd.f32 %v1987, 1.0
  %v2044 = vadd.f32 %v1989, 1.0
  %v2045 = vadd.f32 %v1991, 1.0
  %v2046 = vadd.f32 %v1993, 1.0
  %v2047 = vadd.f32 %v1995, 1.0
  %v2048 = vadd.f32 %v1997, 1.0
  %v2049 = vadd.f32 %v1999, 1.0
  %v2050 = vadd.f32 %v2001, 1.0
  %v2051 = vadd.f32 %v2003, 1.0
  %v2052 = vadd.f32 %v2005, 1.0
  %v2053 = vadd.f32 %v2007, 1.0
  %v2054 = vadd.f32 %v2009, 1.0
  %v2055 = vadd.f32 %v2011, 1.0
  %v2056 = vadd.f32 %v2013, 1.0
  %v2057 = vadd.f32 %v2015, 1.0
  %v2058 = vadd.f32 %v2017, 1.0
  %v2059 = vadd.f32 %v2019, 1.0
  %v2060 = vadd.f32 %v2021, 1.0
  %v2061 = vadd.f32 %v2023, 1.0
  %v2062 = vadd.f32 %v2025, 1.0
  %v2063 = vadd.f32 %v2027, 1.0
  %v2064 = vadd.f32 %v2029, 1.0
  %v2065 = vadd.f32 %v2031, 1.0
  %v2066 = vadd.f32 %v2033, 1.0
  %v2067 = vadd.f32 %v2035, 1.0
  %v2068 = vrcp.pop %v2036
  %v2069 = vmul.f32 1.0, %v2068
  %v2070 = vrcp.pop %v2037
  %v2071 = vmul.f32 1.0, %v2070
  %v2072 = vrcp.pop %v2038
  %v2073 = vmul.f32 1.0, %v2072
  %v2074 = vrcp.pop %v2039
  %v2075 = vmul.f32 1.0, %v2074
  %v2076 = vrcp.pop %v2040
  %v2077 = vmul.f32 1.0, %v2076
  %v2078 = vrcp.pop %v2041
  %v2079 = vmul.f32 1.0, %v2078
  %v2080 = vrcp.pop %v2042
  %v2081 = vmul.f32 1.0, %v2080
  %v2082 = vrcp.pop %v2043
  %v2083 = vmul.f32 1.0, %v2082
  %v2084 = vrcp.pop %v2044
  %v2085 = vmul.f32 1.0, %v2084
  %v2086 = vrcp.pop %v2045
  %v2087 = vmul.f32 1.0, %v2086
  %v2088 = vrcp.pop %v2046
  %v2089 = vmul.f32 1.0, %v2088
  %v2090 = vrcp.pop %v2047
  %v2091 = vmul.f32 1.0, %v2090
  %v2092 = vrcp.pop %v2048
  %v2093 = vmul.f32 1.0, %v2092
  %v2094 = vrcp.pop %v2049
  %v2095 = vmul.f32 1.0, %v2094
  %v2096 = vrcp.pop %v2050
  %v2097 = vmul.f32 1.0, %v2096
  %v2098 = vrcp.pop %v2051
  %v2099 = vmul.f32 1.0, %v2098
  %v2100 = vrcp.pop %v2052
  %v2101 = vmul.f32 1.0, %v2100
  %v2102 = vrcp.pop %v2053
  %v2103 = vmul.f32 1.0, %v2102
  %v2104 = vrcp.pop %v2054
  %v2105 = vmul.f32 1.0, %v2104
  %v2106 = vrcp.pop %v2055
  %v2107 = vmul.f32 1.0, %v2106
  %v2108 = vrcp.pop %v2056
  %v2109 = vmul.f32 1.0, %v2108
  %v2110 = vrcp.pop %v2057
  %v2111 = vmul.f32 1.0, %v2110
  %v2112 = vrcp.pop %v2058
  %v2113 = vmul.f32 1.0, %v2112
  %v2114 = vrcp.pop %v2059
  %v2115 = vmul.f32 1.0, %v2114
  %v2116 = vrcp.pop %v2060
  %v2117 = vmul.f32 1.0, %v2116
  %v2118 = vrcp.pop %v2061
  %v2119 = vmul.f32 1.0, %v2118
  %v2120 = vrcp.pop %v2062
  %v2121 = vmul.f32 1.0, %v2120
  %v2122 = vrcp.pop %v2063
  %v2123 = vmul.f32 1.0, %v2122
  %v2124 = vrcp.pop %v2064
  %v2125 = vmul.f32 1.0, %v2124
  %v2126 = vrcp.pop %v2065
  %v2127 = vmul.f32 1.0, %v2126
  %v2128 = vrcp.pop %v2066
  %v2129 = vmul.f32 1.0, %v2128
  %v2130 = vrcp.pop %v2067
  %v2131 = vmul.f32 1.0, %v2130
  %v2132 = vtanh.pop %v1588
  %v2133 = vtanh.pop %v1589
  %v2134 = vtanh.pop %v1590
  %v2135 = vtanh.pop %v1591
  %v2136 = vtanh.pop %v1592
  %v2137 = vtanh.pop %v1593
  %v2138 = vtanh.pop %v1594
  %v2139 = vtanh.pop %v1595
  %v2140 = vtanh.pop %v1596
  %v2141 = vtanh.pop %v1597
  %v2142 = vtanh.pop %v1598
  %v2143 = vtanh.pop %v1599
  %v2144 = vtanh.pop %v1600
  %v2145 = vtanh.pop %v1601
  %v2146 = vtanh.pop %v1602
  %v2147 = vtanh.pop %v1603
  %v2148 = vtanh.pop %v1604
  %v2149 = vtanh.pop %v1605
  %v2150 = vtanh.pop %v1606
  %v2151 = vtanh.pop %v1607
  %v2152 = vtanh.pop %v1608
  %v2153 = vtanh.pop %v1609
  %v2154 = vtanh.pop %v1610
  %v2155 = vtanh.pop %v1611
  %v2156 = vtanh.pop %v1612
  %v2157 = vtanh.pop %v1613
  %v2158 = vtanh.pop %v1614
  %v2159 = vtanh.pop %v1615
  %v2160 = vtanh.pop %v1616
  %v2161 = vtanh.pop %v1617
  %v2162 = vtanh.pop %v1618
  %v2163 = vtanh.pop %v1619
  %2196 = vrot.lane.b32.xlu0 %v2132, 64
  %v2197 = vpop.permute.xlu0 %2196
  %2198 = vrot.lane.b32.xlu0 %v2133, 64
  %v2199 = vpop.permute.xlu0 %2198
  %2200 = vrot.lane.b32.xlu0 %v2134, 64
  %v2201 = vpop.permute.xlu0 %2200
  %2202 = vrot.lane.b32.xlu0 %v2135, 64
  %v2203 = vpop.permute.xlu0 %2202
  %2204 = vrot.lane.b32.xlu0 %v2136, 64
  %v2205 = vpop.permute.xlu0 %2204
  %2206 = vrot.lane.b32.xlu0 %v2137, 64
  %v2207 = vpop.permute.xlu0 %2206
  %2208 = vrot.lane.b32.xlu0 %v2138, 64
  %v2209 = vpop.permute.xlu0 %2208
  %2210 = vrot.lane.b32.xlu0 %v2139, 64
  %v2211 = vpop.permute.xlu0 %2210
  %2212 = vrot.lane.b32.xlu0 %v2140, 64
  %v2213 = vpop.permute.xlu0 %2212
  %2214 = vrot.lane.b32.xlu0 %v2141, 64
  %v2215 = vpop.permute.xlu0 %2214
  %2216 = vrot.lane.b32.xlu0 %v2142, 64
  %v2217 = vpop.permute.xlu0 %2216
  %2218 = vrot.lane.b32.xlu0 %v2143, 64
  %v2219 = vpop.permute.xlu0 %2218
  %2220 = vrot.lane.b32.xlu0 %v2144, 64
  %v2221 = vpop.permute.xlu0 %2220
  %2222 = vrot.lane.b32.xlu0 %v2145, 64
  %v2223 = vpop.permute.xlu0 %2222
  %2224 = vrot.lane.b32.xlu0 %v2146, 64
  %v2225 = vpop.permute.xlu0 %2224
  %2226 = vrot.lane.b32.xlu0 %v2147, 64
  %v2227 = vpop.permute.xlu0 %2226
  %2228 = vrot.lane.b32.xlu0 %v2148, 64
  %v2229 = vpop.permute.xlu0 %2228
  %2230 = vrot.lane.b32.xlu0 %v2149, 64
  %v2231 = vpop.permute.xlu0 %2230
  %2232 = vrot.lane.b32.xlu0 %v2150, 64
  %v2233 = vpop.permute.xlu0 %2232
  %2234 = vrot.lane.b32.xlu0 %v2151, 64
  %v2235 = vpop.permute.xlu0 %2234
  %2236 = vrot.lane.b32.xlu0 %v2152, 64
  %v2237 = vpop.permute.xlu0 %2236
  %2238 = vrot.lane.b32.xlu0 %v2153, 64
  %v2239 = vpop.permute.xlu0 %2238
  %2240 = vrot.lane.b32.xlu0 %v2154, 64
  %v2241 = vpop.permute.xlu0 %2240
  %2242 = vrot.lane.b32.xlu0 %v2155, 64
  %v2243 = vpop.permute.xlu0 %2242
  %2244 = vrot.lane.b32.xlu0 %v2156, 64
  %v2245 = vpop.permute.xlu0 %2244
  %2246 = vrot.lane.b32.xlu0 %v2157, 64
  %v2247 = vpop.permute.xlu0 %2246
  %2248 = vrot.lane.b32.xlu0 %v2158, 64
  %v2249 = vpop.permute.xlu0 %2248
  %2250 = vrot.lane.b32.xlu0 %v2159, 64
  %v2251 = vpop.permute.xlu0 %2250
  %2252 = vrot.lane.b32.xlu0 %v2160, 64
  %v2253 = vpop.permute.xlu0 %2252
  %2254 = vrot.lane.b32.xlu0 %v2161, 64
  %v2255 = vpop.permute.xlu0 %2254
  %2256 = vrot.lane.b32.xlu0 %v2162, 64
  %v2257 = vpop.permute.xlu0 %2256
  %2258 = vrot.lane.b32.xlu0 %v2163, 64
  %v2259 = vpop.permute.xlu0 %2258
  %v2292 = vmul.f32 %v2069, %v2197
  %v2293 = vmul.f32 %v2071, %v2199
  %v2294 = vmul.f32 %v2073, %v2201
  %v2295 = vmul.f32 %v2075, %v2203
  %v2296 = vmul.f32 %v2077, %v2205
  %v2297 = vmul.f32 %v2079, %v2207
  %v2298 = vmul.f32 %v2081, %v2209
  %v2299 = vmul.f32 %v2083, %v2211
  %v2300 = vmul.f32 %v2085, %v2213
  %v2301 = vmul.f32 %v2087, %v2215
  %v2302 = vmul.f32 %v2089, %v2217
  %v2303 = vmul.f32 %v2091, %v2219
  %v2304 = vmul.f32 %v2093, %v2221
  %v2305 = vmul.f32 %v2095, %v2223
  %v2306 = vmul.f32 %v2097, %v2225
  %v2307 = vmul.f32 %v2099, %v2227
  %v2308 = vmul.f32 %v2101, %v2229
  %v2309 = vmul.f32 %v2103, %v2231
  %v2310 = vmul.f32 %v2105, %v2233
  %v2311 = vmul.f32 %v2107, %v2235
  %v2312 = vmul.f32 %v2109, %v2237
  %v2313 = vmul.f32 %v2111, %v2239
  %v2314 = vmul.f32 %v2113, %v2241
  %v2315 = vmul.f32 %v2115, %v2243
  %v2316 = vmul.f32 %v2117, %v2245
  %v2317 = vmul.f32 %v2119, %v2247
  %v2318 = vmul.f32 %v2121, %v2249
  %v2319 = vmul.f32 %v2123, %v2251
  %v2320 = vmul.f32 %v2125, %v2253
  %v2321 = vmul.f32 %v2127, %v2255
  %v2322 = vmul.f32 %v2129, %v2257
  %v2323 = vmul.f32 %v2131, %v2259
  %v2324 = vmax.f32 %v2292, 0.0
  %v2325 = vmax.f32 %v2293, 0.0
  %v2326 = vmax.f32 %v2294, 0.0
  %v2327 = vmax.f32 %v2295, 0.0
  %v2328 = vmax.f32 %v2296, 0.0
  %v2329 = vmax.f32 %v2297, 0.0
  %v2330 = vmax.f32 %v2298, 0.0
  %v2331 = vmax.f32 %v2299, 0.0
  %v2332 = vmax.f32 %v2300, 0.0
  %v2333 = vmax.f32 %v2301, 0.0
  %v2334 = vmax.f32 %v2302, 0.0
  %v2335 = vmax.f32 %v2303, 0.0
  %v2336 = vmax.f32 %v2304, 0.0
  %v2337 = vmax.f32 %v2305, 0.0
  %v2338 = vmax.f32 %v2306, 0.0
  %v2339 = vmax.f32 %v2307, 0.0
  %v2340 = vmax.f32 %v2308, 0.0
  %v2341 = vmax.f32 %v2309, 0.0
  %v2342 = vmax.f32 %v2310, 0.0
  %v2343 = vmax.f32 %v2311, 0.0
  %v2344 = vmax.f32 %v2312, 0.0
  %v2345 = vmax.f32 %v2313, 0.0
  %v2346 = vmax.f32 %v2314, 0.0
  %v2347 = vmax.f32 %v2315, 0.0
  %v2348 = vmax.f32 %v2316, 0.0
  %v2349 = vmax.f32 %v2317, 0.0
  %v2350 = vmax.f32 %v2318, 0.0
  %v2351 = vmax.f32 %v2319, 0.0
  %v2352 = vmax.f32 %v2320, 0.0
  %v2353 = vmax.f32 %v2321, 0.0
  %v2354 = vmax.f32 %v2322, 0.0
  %v2355 = vmax.f32 %v2323, 0.0
  %v2356 = vld [vmem:[%s6] sm:$0xff]
  %v2357 = vld [vmem:[%s6 + $0x8] sm:$0xff]
  %v2358 = vld [vmem:[%s6 + $0x10] sm:$0xff]
  %v2359 = vld [vmem:[%s6 + $0x18] sm:$0xff]
  %2392 = vrot.lane.b32.xlu0 %v2324, 32
  %v2393 = vpop.permute.xlu0 %2392
  %2394 = vrot.lane.b32.xlu0 %v2325, 32
  %v2395 = vpop.permute.xlu0 %2394
  %2396 = vrot.lane.b32.xlu0 %v2326, 32
  %v2397 = vpop.permute.xlu0 %2396
  %2398 = vrot.lane.b32.xlu0 %v2327, 32
  %v2399 = vpop.permute.xlu0 %2398
  %2400 = vrot.lane.b32.xlu0 %v2328, 32
  %v2401 = vpop.permute.xlu0 %2400
  %2402 = vrot.lane.b32.xlu0 %v2329, 32
  %v2403 = vpop.permute.xlu0 %2402
  %2404 = vrot.lane.b32.xlu0 %v2330, 32
  %v2405 = vpop.permute.xlu0 %2404
  %2406 = vrot.lane.b32.xlu0 %v2331, 32
  %v2407 = vpop.permute.xlu0 %2406
  %2408 = vrot.lane.b32.xlu0 %v2332, 32
  %v2409 = vpop.permute.xlu0 %2408
  %2410 = vrot.lane.b32.xlu0 %v2333, 32
  %v2411 = vpop.permute.xlu0 %2410
  %2412 = vrot.lane.b32.xlu0 %v2334, 32
  %v2413 = vpop.permute.xlu0 %2412
  %2414 = vrot.lane.b32.xlu0 %v2335, 32
  %v2415 = vpop.permute.xlu0 %2414
  %2416 = vrot.lane.b32.xlu0 %v2336, 32
  %v2417 = vpop.permute.xlu0 %2416
  %2418 = vrot.lane.b32.xlu0 %v2337, 32
  %v2419 = vpop.permute.xlu0 %2418
  %2420 = vrot.lane.b32.xlu0 %v2338, 32
  %v2421 = vpop.permute.xlu0 %2420
  %2422 = vrot.lane.b32.xlu0 %v2339, 32
  %v2423 = vpop.permute.xlu0 %2422
  %2424 = vrot.lane.b32.xlu0 %v2340, 32
  %v2425 = vpop.permute.xlu0 %2424
  %2426 = vrot.lane.b32.xlu0 %v2341, 32
  %v2427 = vpop.permute.xlu0 %2426
  %2428 = vrot.lane.b32.xlu0 %v2342, 32
  %v2429 = vpop.permute.xlu0 %2428
  %2430 = vrot.lane.b32.xlu0 %v2343, 32
  %v2431 = vpop.permute.xlu0 %2430
  %2432 = vrot.lane.b32.xlu0 %v2344, 32
  %v2433 = vpop.permute.xlu0 %2432
  %2434 = vrot.lane.b32.xlu0 %v2345, 32
  %v2435 = vpop.permute.xlu0 %2434
  %2436 = vrot.lane.b32.xlu0 %v2346, 32
  %v2437 = vpop.permute.xlu0 %2436
  %2438 = vrot.lane.b32.xlu0 %v2347, 32
  %v2439 = vpop.permute.xlu0 %2438
  %2440 = vrot.lane.b32.xlu0 %v2348, 32
  %v2441 = vpop.permute.xlu0 %2440
  %2442 = vrot.lane.b32.xlu0 %v2349, 32
  %v2443 = vpop.permute.xlu0 %2442
  %2444 = vrot.lane.b32.xlu0 %v2350, 32
  %v2445 = vpop.permute.xlu0 %2444
  %2446 = vrot.lane.b32.xlu0 %v2351, 32
  %v2447 = vpop.permute.xlu0 %2446
  %2448 = vrot.lane.b32.xlu0 %v2352, 32
  %v2449 = vpop.permute.xlu0 %2448
  %2450 = vrot.lane.b32.xlu0 %v2353, 32
  %v2451 = vpop.permute.xlu0 %2450
  %2452 = vrot.lane.b32.xlu0 %v2354, 32
  %v2453 = vpop.permute.xlu0 %2452
  %2454 = vrot.lane.b32.xlu0 %v2355, 32
  %v2455 = vpop.permute.xlu0 %2454
  %2456 = vrot.lane.b32.xlu0 %v978, 32
  %v2457 = vpop.permute.xlu0 %2456
  %v2459 = vsel %vm132, %v2393, 0
  %v2461 = vsel %vm132, %v2395, 0
  %v2463 = vsel %vm132, %v2397, 0
  %v2465 = vsel %vm132, %v2399, 0
  %v2467 = vsel %vm132, %v2401, 0
  %v2469 = vsel %vm132, %v2403, 0
  %v2471 = vsel %vm132, %v2405, 0
  %v2473 = vsel %vm132, %v2407, 0
  %v2475 = vsel %vm132, %v2409, 0
  %v2477 = vsel %vm132, %v2411, 0
  %v2479 = vsel %vm132, %v2413, 0
  %v2481 = vsel %vm132, %v2415, 0
  %v2483 = vsel %vm132, %v2417, 0
  %v2485 = vsel %vm132, %v2419, 0
  %v2487 = vsel %vm132, %v2421, 0
  %v2489 = vsel %vm132, %v2423, 0
  %v2491 = vsel %vm132, %v2425, 0
  %v2493 = vsel %vm132, %v2427, 0
  %v2495 = vsel %vm132, %v2429, 0
  %v2497 = vsel %vm132, %v2431, 0
  %v2499 = vsel %vm132, %v2433, 0
  %v2501 = vsel %vm132, %v2435, 0
  %v2503 = vsel %vm132, %v2437, 0
  %v2505 = vsel %vm132, %v2439, 0
  %v2507 = vsel %vm132, %v2441, 0
  %v2509 = vsel %vm132, %v2443, 0
  %v2511 = vsel %vm132, %v2445, 0
  %v2513 = vsel %vm132, %v2447, 0
  %v2515 = vsel %vm132, %v2449, 0
  %v2517 = vsel %vm132, %v2451, 0
  %v2519 = vsel %vm132, %v2453, 0
  %v2521 = vsel %vm132, %v2455, 0
  %2523 = vmatprep.subr.mxu0 0.0
  %2524 = vmatpush1.msra.mxu0 %v2356
  %2525 = vmatprep.subr.mxu0 0.0
  %2526 = vmatpush1.msra.mxu0 %v2357
  %2527 = vmatprep.subr.mxu0 0.0
  %2528 = vmatpush1.msra.mxu0 %v2358
  %2529 = vmatprep.subr.mxu0 0.0
  %2530 = vmatpush1.msra.mxu0 %v2359
  %2531 = vmatprep.subr.mxu0 0.0
  %2532 = vmatpush1.msra.mxu0 0.0
  %2533 = vmatprep.subr.mxu0 0.0
  %2534 = vmatpush1.msra.mxu0 0.0
  %2535 = vmatprep.subr.mxu0 0.0
  %2536 = vmatpush1.msra.mxu0 0.0
  %2537 = vmatprep.subr.mxu0 0.0
  %2538 = vmatpush1.msra.mxu0 0.0
  %2539 = vmatprep.subr.mxu0 0.0
  %2540 = vmatpush1.msra.mxu0 0.0
  %2541 = vmatprep.subr.mxu0 0.0
  %2542 = vmatpush1.msra.mxu0 0.0
  %2543 = vmatprep.subr.mxu0 0.0
  %2544 = vmatpush1.msra.mxu0 0.0
  %2545 = vmatprep.subr.mxu0 0.0
  %2546 = vmatpush1.msra.mxu0 0.0
  %2547 = vmatprep.subr.mxu0 0.0
  %2548 = vmatpush1.msra.mxu0 0.0
  %2549 = vmatprep.subr.mxu0 0.0
  %2550 = vmatpush1.msra.mxu0 0.0
  %2551 = vmatprep.subr.mxu0 0.0
  %2552 = vmatpush1.msra.mxu0 0.0
  %2553 = vmatprep.subr.mxu0 0.0
  %2554 = vmatpush1.msra.mxu0 0.0
  %2555 = vmatprep.subr.mxu0 0.0
  %2556 = vmatpush1.msra.mxu0 0.0
  %2557 = vmatprep.subr.mxu0 0.0
  %2558 = vmatpush1.msra.mxu0 0.0
  %2559 = vmatprep.subr.mxu0 0.0
  %2560 = vmatpush1.msra.mxu0 0.0
  %2561 = vmatprep.subr.mxu0 0.0
  %2562 = vmatpush1.msra.mxu0 0.0
  %2563 = vmatprep.subr.mxu0 0.0
  %2564 = vmatpush1.msra.mxu0 0.0
  %2565 = vmatprep.subr.mxu0 0.0
  %2566 = vmatpush1.msra.mxu0 0.0
  %2567 = vmatprep.subr.mxu0 0.0
  %2568 = vmatpush1.msra.mxu0 0.0
  %2569 = vmatprep.subr.mxu0 0.0
  %2570 = vmatpush1.msra.mxu0 0.0
  %2571 = vmatprep.subr.mxu0 0.0
  %2572 = vmatpush1.msra.mxu0 0.0
  %2573 = vmatprep.subr.mxu0 0.0
  %2574 = vmatpush1.msra.mxu0 0.0
  %2575 = vmatprep.subr.mxu0 0.0
  %2576 = vmatpush1.msra.mxu0 0.0
  %2577 = vmatprep.subr.mxu0 0.0
  %2578 = vmatpush1.msra.mxu0 0.0
  %2579 = vmatprep.subr.mxu0 0.0
  %2580 = vmatpush1.msra.mxu0 0.0
  %2581 = vmatprep.subr.mxu0 0.0
  %2582 = vmatpush1.msra.mxu0 0.0
  %2583 = vmatprep.subr.mxu0 0.0
  %2584 = vmatpush1.msra.mxu0 0.0
  %2585 = vmatprep.subr.mxu0 0.0
  %2586 = vmatpush1.msra.mxu0 0.0
  %2587 = vmatprep.mubr.f32.mxu0 0.0
  %2588 = vmatmul.mubr.f32.gmra.mrb[0].mxu0 %v2459
  %v2589 = vpop.f32.mrb[0].mxu0
  %v2590 = vadd.f32 %v2457, %v2589
  %v2591 = vpop.f32.mrb[0].mxu0
  %2592 = vmatprep.mubr.f32.mxu0 0.0
  %2593 = vmatmul.mubr.f32.gmra.mrb[0].mxu0 %v2461
  %v2594 = vpop.f32.mrb[0].mxu0
  %v2595 = vadd.f32 %v2457, %v2594
  %v2596 = vpop.f32.mrb[0].mxu0
  %2597 = vmatprep.mubr.f32.mxu0 0.0
  %2598 = vmatmul.mubr.f32.gmra.mrb[0].mxu0 %v2463
  %v2599 = vpop.f32.mrb[0].mxu0
  %v2600 = vadd.f32 %v2457, %v2599
  %v2601 = vpop.f32.mrb[0].mxu0
  %2602 = vmatprep.mubr.f32.mxu0 0.0
  %2603 = vmatmul.mubr.f32.gmra.mrb[0].mxu0 %v2465
  %v2604 = vpop.f32.mrb[0].mxu0
  %v2605 = vadd.f32 %v2457, %v2604
  %v2606 = vpop.f32.mrb[0].mxu0
  %2607 = vmatprep.mubr.f32.mxu0 0.0
  %2608 = vmatmul.mubr.f32.gmra.mrb[0].mxu0 %v2467
  %v2609 = vpop.f32.mrb[0].mxu0
  %v2610 = vadd.f32 %v2457, %v2609
  %v2611 = vpop.f32.mrb[0].mxu0
  %2612 = vmatprep.mubr.f32.mxu0 0.0
  %2613 = vmatmul.mubr.f32.gmra.mrb[0].mxu0 %v2469
  %v2614 = vpop.f32.mrb[0].mxu0
  %v2615 = vadd.f32 %v2457, %v2614
  %v2616 = vpop.f32.mrb[0].mxu0
  %2617 = vmatprep.mubr.f32.mxu0 0.0
  %2618 = vmatmul.mubr.f32.gmra.mrb[0].mxu0 %v2471
  %v2619 = vpop.f32.mrb[0].mxu0
  %v2620 = vadd.f32 %v2457, %v2619
  %v2621 = vpop.f32.mrb[0].mxu0
  %2622 = vmatprep.mubr.f32.mxu0 0.0
  %2623 = vmatmul.mubr.f32.gmra.mrb[0].mxu0 %v2473
  %v2624 = vpop.f32.mrb[0].mxu0
  %v2625 = vadd.f32 %v2457, %v2624
  %v2626 = vpop.f32.mrb[0].mxu0
  %2627 = vmatprep.mubr.f32.mxu0 0.0
  %2628 = vmatmul.mubr.f32.gmra.mrb[0].mxu0 %v2475
  %v2629 = vpop.f32.mrb[0].mxu0
  %v2630 = vadd.f32 %v2457, %v2629
  %v2631 = vpop.f32.mrb[0].mxu0
  %2632 = vmatprep.mubr.f32.mxu0 0.0
  %2633 = vmatmul.mubr.f32.gmra.mrb[0].mxu0 %v2477
  %v2634 = vpop.f32.mrb[0].mxu0
  %v2635 = vadd.f32 %v2457, %v2634
  %v2636 = vpop.f32.mrb[0].mxu0
  %2637 = vmatprep.mubr.f32.mxu0 0.0
  %2638 = vmatmul.mubr.f32.gmra.mrb[0].mxu0 %v2479
  %v2639 = vpop.f32.mrb[0].mxu0
  %v2640 = vadd.f32 %v2457, %v2639
  %v2641 = vpop.f32.mrb[0].mxu0
  %2642 = vmatprep.mubr.f32.mxu0 0.0
  %2643 = vmatmul.mubr.f32.gmra.mrb[0].mxu0 %v2481
  %v2644 = vpop.f32.mrb[0].mxu0
  %v2645 = vadd.f32 %v2457, %v2644
  %v2646 = vpop.f32.mrb[0].mxu0
  %2647 = vmatprep.mubr.f32.mxu0 0.0
  %2648 = vmatmul.mubr.f32.gmra.mrb[0].mxu0 %v2483
  %v2649 = vpop.f32.mrb[0].mxu0
  %v2650 = vadd.f32 %v2457, %v2649
  %v2651 = vpop.f32.mrb[0].mxu0
  %2652 = vmatprep.mubr.f32.mxu0 0.0
  %2653 = vmatmul.mubr.f32.gmra.mrb[0].mxu0 %v2485
  %v2654 = vpop.f32.mrb[0].mxu0
  %v2655 = vadd.f32 %v2457, %v2654
  %v2656 = vpop.f32.mrb[0].mxu0
  %2657 = vmatprep.mubr.f32.mxu0 0.0
  %2658 = vmatmul.mubr.f32.gmra.mrb[0].mxu0 %v2487
  %v2659 = vpop.f32.mrb[0].mxu0
  %v2660 = vadd.f32 %v2457, %v2659
  %v2661 = vpop.f32.mrb[0].mxu0
  %2662 = vmatprep.mubr.f32.mxu0 0.0
  %2663 = vmatmul.mubr.f32.gmra.mrb[0].mxu0 %v2489
  %v2664 = vpop.f32.mrb[0].mxu0
  %v2665 = vadd.f32 %v2457, %v2664
  %v2666 = vpop.f32.mrb[0].mxu0
  %2667 = vmatprep.mubr.f32.mxu0 0.0
  %2668 = vmatmul.mubr.f32.gmra.mrb[0].mxu0 %v2491
  %v2669 = vpop.f32.mrb[0].mxu0
  %v2670 = vadd.f32 %v2457, %v2669
  %v2671 = vpop.f32.mrb[0].mxu0
  %2672 = vmatprep.mubr.f32.mxu0 0.0
  %2673 = vmatmul.mubr.f32.gmra.mrb[0].mxu0 %v2493
  %v2674 = vpop.f32.mrb[0].mxu0
  %v2675 = vadd.f32 %v2457, %v2674
  %v2676 = vpop.f32.mrb[0].mxu0
  %2677 = vmatprep.mubr.f32.mxu0 0.0
  %2678 = vmatmul.mubr.f32.gmra.mrb[0].mxu0 %v2495
  %v2679 = vpop.f32.mrb[0].mxu0
  %v2680 = vadd.f32 %v2457, %v2679
  %v2681 = vpop.f32.mrb[0].mxu0
  %2682 = vmatprep.mubr.f32.mxu0 0.0
  %2683 = vmatmul.mubr.f32.gmra.mrb[0].mxu0 %v2497
  %v2684 = vpop.f32.mrb[0].mxu0
  %v2685 = vadd.f32 %v2457, %v2684
  %v2686 = vpop.f32.mrb[0].mxu0
  %2687 = vmatprep.mubr.f32.mxu0 0.0
  %2688 = vmatmul.mubr.f32.gmra.mrb[0].mxu0 %v2499
  %v2689 = vpop.f32.mrb[0].mxu0
  %v2690 = vadd.f32 %v2457, %v2689
  %v2691 = vpop.f32.mrb[0].mxu0
  %2692 = vmatprep.mubr.f32.mxu0 0.0
  %2693 = vmatmul.mubr.f32.gmra.mrb[0].mxu0 %v2501
  %v2694 = vpop.f32.mrb[0].mxu0
  %v2695 = vadd.f32 %v2457, %v2694
  %v2696 = vpop.f32.mrb[0].mxu0
  %2697 = vmatprep.mubr.f32.mxu0 0.0
  %2698 = vmatmul.mubr.f32.gmra.mrb[0].mxu0 %v2503
  %v2699 = vpop.f32.mrb[0].mxu0
  %v2700 = vadd.f32 %v2457, %v2699
  %v2701 = vpop.f32.mrb[0].mxu0
  %2702 = vmatprep.mubr.f32.mxu0 0.0
  %2703 = vmatmul.mubr.f32.gmra.mrb[0].mxu0 %v2505
  %v2704 = vpop.f32.mrb[0].mxu0
  %v2705 = vadd.f32 %v2457, %v2704
  %v2706 = vpop.f32.mrb[0].mxu0
  %2707 = vmatprep.mubr.f32.mxu0 0.0
  %2708 = vmatmul.mubr.f32.gmra.mrb[0].mxu0 %v2507
  %v2709 = vpop.f32.mrb[0].mxu0
  %v2710 = vadd.f32 %v2457, %v2709
  %v2711 = vpop.f32.mrb[0].mxu0
  %2712 = vmatprep.mubr.f32.mxu0 0.0
  %2713 = vmatmul.mubr.f32.gmra.mrb[0].mxu0 %v2509
  %v2714 = vpop.f32.mrb[0].mxu0
  %v2715 = vadd.f32 %v2457, %v2714
  %v2716 = vpop.f32.mrb[0].mxu0
  %2717 = vmatprep.mubr.f32.mxu0 0.0
  %2718 = vmatmul.mubr.f32.gmra.mrb[0].mxu0 %v2511
  %v2719 = vpop.f32.mrb[0].mxu0
  %v2720 = vadd.f32 %v2457, %v2719
  %v2721 = vpop.f32.mrb[0].mxu0
  %2722 = vmatprep.mubr.f32.mxu0 0.0
  %2723 = vmatmul.mubr.f32.gmra.mrb[0].mxu0 %v2513
  %v2724 = vpop.f32.mrb[0].mxu0
  %v2725 = vadd.f32 %v2457, %v2724
  %v2726 = vpop.f32.mrb[0].mxu0
  %2727 = vmatprep.mubr.f32.mxu0 0.0
  %2728 = vmatmul.mubr.f32.gmra.mrb[0].mxu0 %v2515
  %v2729 = vpop.f32.mrb[0].mxu0
  %v2730 = vadd.f32 %v2457, %v2729
  %v2731 = vpop.f32.mrb[0].mxu0
  %2732 = vmatprep.mubr.f32.mxu0 0.0
  %2733 = vmatmul.mubr.f32.gmra.mrb[0].mxu0 %v2517
  %v2734 = vpop.f32.mrb[0].mxu0
  %v2735 = vadd.f32 %v2457, %v2734
  %v2736 = vpop.f32.mrb[0].mxu0
  %2737 = vmatprep.mubr.f32.mxu0 0.0
  %2738 = vmatmul.mubr.f32.gmra.mrb[0].mxu0 %v2519
  %v2739 = vpop.f32.mrb[0].mxu0
  %v2740 = vadd.f32 %v2457, %v2739
  %v2741 = vpop.f32.mrb[0].mxu0
  %2742 = vmatprep.mubr.f32.mxu0 0.0
  %2743 = vmatmul.mubr.f32.gmra.mrb[0].mxu0 %v2521
  %v2744 = vpop.f32.mrb[0].mxu0
  %v2745 = vadd.f32 %v2457, %v2744
  %v2746 = vpop.f32.mrb[0].mxu0
  %2747 = vdwg.mxu0
  %2748 = vst.msk [vmem:[%s7] sm:$0xff] %vm132, %v2590
  %2749 = vst.msk [vmem:[%s7 + $0x8] sm:$0xff] %vm132, %v2595
  %2750 = vst.msk [vmem:[%s7 + $0x10] sm:$0xff] %vm132, %v2600
  %2751 = vst.msk [vmem:[%s7 + $0x18] sm:$0xff] %vm132, %v2605
  %2752 = vst.msk [vmem:[%s7 + $0x20] sm:$0xff] %vm132, %v2610
  %2753 = vst.msk [vmem:[%s7 + $0x28] sm:$0xff] %vm132, %v2615
  %2754 = vst.msk [vmem:[%s7 + $0x30] sm:$0xff] %vm132, %v2620
  %2755 = vst.msk [vmem:[%s7 + $0x38] sm:$0xff] %vm132, %v2625
  %2756 = vst.msk [vmem:[%s7 + $0x40] sm:$0xff] %vm132, %v2630
  %2757 = vst.msk [vmem:[%s7 + $0x48] sm:$0xff] %vm132, %v2635
  %2758 = vst.msk [vmem:[%s7 + $0x50] sm:$0xff] %vm132, %v2640
  %2759 = vst.msk [vmem:[%s7 + $0x58] sm:$0xff] %vm132, %v2645
  %2760 = vst.msk [vmem:[%s7 + $0x60] sm:$0xff] %vm132, %v2650
  %2761 = vst.msk [vmem:[%s7 + $0x68] sm:$0xff] %vm132, %v2655
  %2762 = vst.msk [vmem:[%s7 + $0x70] sm:$0xff] %vm132, %v2660
  %2763 = vst.msk [vmem:[%s7 + $0x78] sm:$0xff] %vm132, %v2665
  %2764 = vst.msk [vmem:[%s7 + $0x80] sm:$0xff] %vm132, %v2670
  %2765 = vst.msk [vmem:[%s7 + $0x88] sm:$0xff] %vm132, %v2675
  %2766 = vst.msk [vmem:[%s7 + $0x90] sm:$0xff] %vm132, %v2680
  %2767 = vst.msk [vmem:[%s7 + $0x98] sm:$0xff] %vm132, %v2685
  %2768 = vst.msk [vmem:[%s7 + $0xa0] sm:$0xff] %vm132, %v2690
  %2769 = vst.msk [vmem:[%s7 + $0xa8] sm:$0xff] %vm132, %v2695
  %2770 = vst.msk [vmem:[%s7 + $0xb0] sm:$0xff] %vm132, %v2700
  %2771 = vst.msk [vmem:[%s7 + $0xb8] sm:$0xff] %vm132, %v2705
  %2772 = vst.msk [vmem:[%s7 + $0xc0] sm:$0xff] %vm132, %v2710
  %2773 = vst.msk [vmem:[%s7 + $0xc8] sm:$0xff] %vm132, %v2715
  %2774 = vst.msk [vmem:[%s7 + $0xd0] sm:$0xff] %vm132, %v2720
  %2775 = vst.msk [vmem:[%s7 + $0xd8] sm:$0xff] %vm132, %v2725
  %2776 = vst.msk [vmem:[%s7 + $0xe0] sm:$0xff] %vm132, %v2730
  %2777 = vst.msk [vmem:[%s7 + $0xe8] sm:$0xff] %vm132, %v2735
  %2778 = vst.msk [vmem:[%s7 + $0xf0] sm:$0xff] %vm132, %v2740
  %2779 = vst.msk [vmem:[%s7 + $0xf8] sm:$0xff] %vm132, %v2745
  %2812 = vrot.lane.b32.xlu0 %v2292, 32
  %v2813 = vpop.permute.xlu0 %2812
  %2814 = vrot.lane.b32.xlu0 %v2293, 32
  %v2815 = vpop.permute.xlu0 %2814
  %2816 = vrot.lane.b32.xlu0 %v2294, 32
  %v2817 = vpop.permute.xlu0 %2816
  %2818 = vrot.lane.b32.xlu0 %v2295, 32
  %v2819 = vpop.permute.xlu0 %2818
  %2820 = vrot.lane.b32.xlu0 %v2296, 32
  %v2821 = vpop.permute.xlu0 %2820
  %2822 = vrot.lane.b32.xlu0 %v2297, 32
  %v2823 = vpop.permute.xlu0 %2822
  %2824 = vrot.lane.b32.xlu0 %v2298, 32
  %v2825 = vpop.permute.xlu0 %2824
  %2826 = vrot.lane.b32.xlu0 %v2299, 32
  %v2827 = vpop.permute.xlu0 %2826
  %2828 = vrot.lane.b32.xlu0 %v2300, 32
  %v2829 = vpop.permute.xlu0 %2828
  %2830 = vrot.lane.b32.xlu0 %v2301, 32
  %v2831 = vpop.permute.xlu0 %2830
  %2832 = vrot.lane.b32.xlu0 %v2302, 32
  %v2833 = vpop.permute.xlu0 %2832
  %2834 = vrot.lane.b32.xlu0 %v2303, 32
  %v2835 = vpop.permute.xlu0 %2834
  %2836 = vrot.lane.b32.xlu0 %v2304, 32
  %v2837 = vpop.permute.xlu0 %2836
  %2838 = vrot.lane.b32.xlu0 %v2305, 32
  %v2839 = vpop.permute.xlu0 %2838
  %2840 = vrot.lane.b32.xlu0 %v2306, 32
  %v2841 = vpop.permute.xlu0 %2840
  %2842 = vrot.lane.b32.xlu0 %v2307, 32
  %v2843 = vpop.permute.xlu0 %2842
  %2844 = vrot.lane.b32.xlu0 %v2308, 32
  %v2845 = vpop.permute.xlu0 %2844
  %2846 = vrot.lane.b32.xlu0 %v2309, 32
  %v2847 = vpop.permute.xlu0 %2846
  %2848 = vrot.lane.b32.xlu0 %v2310, 32
  %v2849 = vpop.permute.xlu0 %2848
  %2850 = vrot.lane.b32.xlu0 %v2311, 32
  %v2851 = vpop.permute.xlu0 %2850
  %2852 = vrot.lane.b32.xlu0 %v2312, 32
  %v2853 = vpop.permute.xlu0 %2852
  %2854 = vrot.lane.b32.xlu0 %v2313, 32
  %v2855 = vpop.permute.xlu0 %2854
  %2856 = vrot.lane.b32.xlu0 %v2314, 32
  %v2857 = vpop.permute.xlu0 %2856
  %2858 = vrot.lane.b32.xlu0 %v2315, 32
  %v2859 = vpop.permute.xlu0 %2858
  %2860 = vrot.lane.b32.xlu0 %v2316, 32
  %v2861 = vpop.permute.xlu0 %2860
  %2862 = vrot.lane.b32.xlu0 %v2317, 32
  %v2863 = vpop.permute.xlu0 %2862
  %2864 = vrot.lane.b32.xlu0 %v2318, 32
  %v2865 = vpop.permute.xlu0 %2864
  %2866 = vrot.lane.b32.xlu0 %v2319, 32
  %v2867 = vpop.permute.xlu0 %2866
  %2868 = vrot.lane.b32.xlu0 %v2320, 32
  %v2869 = vpop.permute.xlu0 %2868
  %2870 = vrot.lane.b32.xlu0 %v2321, 32
  %v2871 = vpop.permute.xlu0 %2870
  %2872 = vrot.lane.b32.xlu0 %v2322, 32
  %v2873 = vpop.permute.xlu0 %2872
  %2874 = vrot.lane.b32.xlu0 %v2323, 32
  %v2875 = vpop.permute.xlu0 %2874
  %2908 = vst.msk [vmem:[%s8] sm:$0xff] %vm132, %v2813
  %2909 = vst.msk [vmem:[%s8 + $0x8] sm:$0xff] %vm132, %v2815
  %2910 = vst.msk [vmem:[%s8 + $0x10] sm:$0xff] %vm132, %v2817
  %2911 = vst.msk [vmem:[%s8 + $0x18] sm:$0xff] %vm132, %v2819
  %2912 = vst.msk [vmem:[%s8 + $0x20] sm:$0xff] %vm132, %v2821
  %2913 = vst.msk [vmem:[%s8 + $0x28] sm:$0xff] %vm132, %v2823
  %2914 = vst.msk [vmem:[%s8 + $0x30] sm:$0xff] %vm132, %v2825
  %2915 = vst.msk [vmem:[%s8 + $0x38] sm:$0xff] %vm132, %v2827
  %2916 = vst.msk [vmem:[%s8 + $0x40] sm:$0xff] %vm132, %v2829
  %2917 = vst.msk [vmem:[%s8 + $0x48] sm:$0xff] %vm132, %v2831
  %2918 = vst.msk [vmem:[%s8 + $0x50] sm:$0xff] %vm132, %v2833
  %2919 = vst.msk [vmem:[%s8 + $0x58] sm:$0xff] %vm132, %v2835
  %2920 = vst.msk [vmem:[%s8 + $0x60] sm:$0xff] %vm132, %v2837
  %2921 = vst.msk [vmem:[%s8 + $0x68] sm:$0xff] %vm132, %v2839
  %2922 = vst.msk [vmem:[%s8 + $0x70] sm:$0xff] %vm132, %v2841
  %2923 = vst.msk [vmem:[%s8 + $0x78] sm:$0xff] %vm132, %v2843
  %2924 = vst.msk [vmem:[%s8 + $0x80] sm:$0xff] %vm132, %v2845
  %2925 = vst.msk [vmem:[%s8 + $0x88] sm:$0xff] %vm132, %v2847
  %2926 = vst.msk [vmem:[%s8 + $0x90] sm:$0xff] %vm132, %v2849
  %2927 = vst.msk [vmem:[%s8 + $0x98] sm:$0xff] %vm132, %v2851
  %2928 = vst.msk [vmem:[%s8 + $0xa0] sm:$0xff] %vm132, %v2853
  %2929 = vst.msk [vmem:[%s8 + $0xa8] sm:$0xff] %vm132, %v2855
  %2930 = vst.msk [vmem:[%s8 + $0xb0] sm:$0xff] %vm132, %v2857
  %2931 = vst.msk [vmem:[%s8 + $0xb8] sm:$0xff] %vm132, %v2859
  %2932 = vst.msk [vmem:[%s8 + $0xc0] sm:$0xff] %vm132, %v2861
  %2933 = vst.msk [vmem:[%s8 + $0xc8] sm:$0xff] %vm132, %v2863
  %2934 = vst.msk [vmem:[%s8 + $0xd0] sm:$0xff] %vm132, %v2865
  %2935 = vst.msk [vmem:[%s8 + $0xd8] sm:$0xff] %vm132, %v2867
  %2936 = vst.msk [vmem:[%s8 + $0xe0] sm:$0xff] %vm132, %v2869
  %2937 = vst.msk [vmem:[%s8 + $0xe8] sm:$0xff] %vm132, %v2871
  %2938 = vst.msk [vmem:[%s8 + $0xf0] sm:$0xff] %vm132, %v2873
  %2939 = vst.msk [vmem:[%s8 + $0xf8] sm:$0xff] %vm132, %v2875
  %2940 = vrot.lane.b32.xlu0 %v1588, 96
  %v2941 = vpop.permute.xlu0 %2940
  %2942 = vrot.lane.b32.xlu0 %v1589, 96
  %v2943 = vpop.permute.xlu0 %2942
  %2944 = vrot.lane.b32.xlu0 %v1590, 96
  %v2945 = vpop.permute.xlu0 %2944
  %2946 = vrot.lane.b32.xlu0 %v1591, 96
  %v2947 = vpop.permute.xlu0 %2946
  %2948 = vrot.lane.b32.xlu0 %v1592, 96
  %v2949 = vpop.permute.xlu0 %2948
  %2950 = vrot.lane.b32.xlu0 %v1593, 96
  %v2951 = vpop.permute.xlu0 %2950
  %2952 = vrot.lane.b32.xlu0 %v1594, 96
  %v2953 = vpop.permute.xlu0 %2952
  %2954 = vrot.lane.b32.xlu0 %v1595, 96
  %v2955 = vpop.permute.xlu0 %2954
  %2956 = vrot.lane.b32.xlu0 %v1596, 96
  %v2957 = vpop.permute.xlu0 %2956
  %2958 = vrot.lane.b32.xlu0 %v1597, 96
  %v2959 = vpop.permute.xlu0 %2958
  %2960 = vrot.lane.b32.xlu0 %v1598, 96
  %v2961 = vpop.permute.xlu0 %2960
  %2962 = vrot.lane.b32.xlu0 %v1599, 96
  %v2963 = vpop.permute.xlu0 %2962
  %2964 = vrot.lane.b32.xlu0 %v1600, 96
  %v2965 = vpop.permute.xlu0 %2964
  %2966 = vrot.lane.b32.xlu0 %v1601, 96
  %v2967 = vpop.permute.xlu0 %2966
  %2968 = vrot.lane.b32.xlu0 %v1602, 96
  %v2969 = vpop.permute.xlu0 %2968
  %2970 = vrot.lane.b32.xlu0 %v1603, 96
  %v2971 = vpop.permute.xlu0 %2970
  %2972 = vrot.lane.b32.xlu0 %v1604, 96
  %v2973 = vpop.permute.xlu0 %2972
  %2974 = vrot.lane.b32.xlu0 %v1605, 96
  %v2975 = vpop.permute.xlu0 %2974
  %2976 = vrot.lane.b32.xlu0 %v1606, 96
  %v2977 = vpop.permute.xlu0 %2976
  %2978 = vrot.lane.b32.xlu0 %v1607, 96
  %v2979 = vpop.permute.xlu0 %2978
  %2980 = vrot.lane.b32.xlu0 %v1608, 96
  %v2981 = vpop.permute.xlu0 %2980
  %2982 = vrot.lane.b32.xlu0 %v1609, 96
  %v2983 = vpop.permute.xlu0 %2982
  %2984 = vrot.lane.b32.xlu0 %v1610, 96
  %v2985 = vpop.permute.xlu0 %2984
  %2986 = vrot.lane.b32.xlu0 %v1611, 96
  %v2987 = vpop.permute.xlu0 %2986
  %2988 = vrot.lane.b32.xlu0 %v1612, 96
  %v2989 = vpop.permute.xlu0 %2988
  %2990 = vrot.lane.b32.xlu0 %v1613, 96
  %v2991 = vpop.permute.xlu0 %2990
  %2992 = vrot.lane.b32.xlu0 %v1614, 96
  %v2993 = vpop.permute.xlu0 %2992
  %2994 = vrot.lane.b32.xlu0 %v1615, 96
  %v2995 = vpop.permute.xlu0 %2994
  %2996 = vrot.lane.b32.xlu0 %v1616, 96
  %v2997 = vpop.permute.xlu0 %2996
  %2998 = vrot.lane.b32.xlu0 %v1617, 96
  %v2999 = vpop.permute.xlu0 %2998
  %3000 = vrot.lane.b32.xlu0 %v1618, 96
  %v3001 = vpop.permute.xlu0 %3000
  %3002 = vrot.lane.b32.xlu0 %v1619, 96
  %v3003 = vpop.permute.xlu0 %3002
  %3036 = vst.msk [vmem:[%s9] sm:$0xff] %vm132, %v2941
  %3037 = vst.msk [vmem:[%s9 + $0x8] sm:$0xff] %vm132, %v2943
  %3038 = vst.msk [vmem:[%s9 + $0x10] sm:$0xff] %vm132, %v2945
  %3039 = vst.msk [vmem:[%s9 + $0x18] sm:$0xff] %vm132, %v2947
  %3040 = vst.msk [vmem:[%s9 + $0x20] sm:$0xff] %vm132, %v2949
  %3041 = vst.msk [vmem:[%s9 + $0x28] sm:$0xff] %vm132, %v2951
  %3042 = vst.msk [vmem:[%s9 + $0x30] sm:$0xff] %vm132, %v2953
  %3043 = vst.msk [vmem:[%s9 + $0x38] sm:$0xff] %vm132, %v2955
  %3044 = vst.msk [vmem:[%s9 + $0x40] sm:$0xff] %vm132, %v2957
  %3045 = vst.msk [vmem:[%s9 + $0x48] sm:$0xff] %vm132, %v2959
  %3046 = vst.msk [vmem:[%s9 + $0x50] sm:$0xff] %vm132, %v2961
  %3047 = vst.msk [vmem:[%s9 + $0x58] sm:$0xff] %vm132, %v2963
  %3048 = vst.msk [vmem:[%s9 + $0x60] sm:$0xff] %vm132, %v2965
  %3049 = vst.msk [vmem:[%s9 + $0x68] sm:$0xff] %vm132, %v2967
  %3050 = vst.msk [vmem:[%s9 + $0x70] sm:$0xff] %vm132, %v2969
  %3051 = vst.msk [vmem:[%s9 + $0x78] sm:$0xff] %vm132, %v2971
  %3052 = vst.msk [vmem:[%s9 + $0x80] sm:$0xff] %vm132, %v2973
  %3053 = vst.msk [vmem:[%s9 + $0x88] sm:$0xff] %vm132, %v2975
  %3054 = vst.msk [vmem:[%s9 + $0x90] sm:$0xff] %vm132, %v2977
  %3055 = vst.msk [vmem:[%s9 + $0x98] sm:$0xff] %vm132, %v2979
  %3056 = vst.msk [vmem:[%s9 + $0xa0] sm:$0xff] %vm132, %v2981
  %3057 = vst.msk [vmem:[%s9 + $0xa8] sm:$0xff] %vm132, %v2983
  %3058 = vst.msk [vmem:[%s9 + $0xb0] sm:$0xff] %vm132, %v2985
  %3059 = vst.msk [vmem:[%s9 + $0xb8] sm:$0xff] %vm132, %v2987
  %3060 = vst.msk [vmem:[%s9 + $0xc0] sm:$0xff] %vm132, %v2989
  %3061 = vst.msk [vmem:[%s9 + $0xc8] sm:$0xff] %vm132, %v2991
  %3062 = vst.msk [vmem:[%s9 + $0xd0] sm:$0xff] %vm132, %v2993
  %3063 = vst.msk [vmem:[%s9 + $0xd8] sm:$0xff] %vm132, %v2995
  %3064 = vst.msk [vmem:[%s9 + $0xe0] sm:$0xff] %vm132, %v2997
  %3065 = vst.msk [vmem:[%s9 + $0xe8] sm:$0xff] %vm132, %v2999
  %3066 = vst.msk [vmem:[%s9 + $0xf0] sm:$0xff] %vm132, %v3001
  %3067 = vst.msk [vmem:[%s9 + $0xf8] sm:$0xff] %vm132, %v3003
  // Predicated region
  $region30: #{_forward_impl.1} parent=0 // pred_check
    _
  $region31: #{_forward_impl.1} parent=0 // pred_check_branch
    %3069 = sbr.rel (0) target = $region33
  $region32: #{_forward_impl.1} parent=0 // pred_region
    _
  $region33: #{_forward_impl.1} parent=0 // pred_fallthru
    _
  // Predicated region
  $region34: #{_forward_impl.1} parent=0 // pred_check
    _
  $region35: #{_forward_impl.1} parent=0 // pred_check_branch
    %3071 = sbr.rel (0) target = $region37
  $region36: #{_forward_impl.1} parent=0 // pred_region
    _
  $region37: #{_forward_impl.1} parent=0 // pred_fallthru
    _
  // Predicated region
  $region38: #{_forward_impl.1} parent=0 // pred_check
    _
  $region39: #{_forward_impl.1} parent=0 // pred_check_branch
    %3073 = sbr.rel (0) target = $region41
  $region40: #{_forward_impl.1} parent=0 // pred_region
    _
  $region41: #{_forward_impl.1} parent=0 // pred_fallthru
    _
  // Predicated region
  $region42: #{_forward_impl.1} parent=0 // pred_check
    _
  $region43: #{_forward_impl.1} parent=0 // pred_check_branch
    %3075 = sbr.rel (0) target = $region45
  $region44: #{_forward_impl.1} parent=0 // pred_region
    _
  $region45: #{_forward_impl.1} parent=0 // pred_fallthru
    _
  // Predicated region
  $region46: #{_forward_impl.1} parent=0 // pred_check
    _
  $region47: #{_forward_impl.1} parent=0 // pred_check_branch
    %3077 = sbr.rel (0) target = $region49
  $region48: #{_forward_impl.1} parent=0 // pred_region
    _
  $region49: #{_forward_impl.1} parent=0 // pred_fallthru
    _
  // Predicated region
  $region50: #{_forward_impl.1} parent=0 // pred_check
    _
  $region51: #{_forward_impl.1} parent=0 // pred_check_branch
    %3079 = sbr.rel (0) target = $region53
  $region52: #{_forward_impl.1} parent=0 // pred_region
    _
  $region53: #{_forward_impl.1} parent=0 // pred_fallthru
    _

</llo_original>
